<compile_context>
chip_gen: v7x
topology: tpu7x:2x2x1
jax: 0.10.0
libtpu: 0.0.40
codegen_flags: <defaults>
</compile_context>

<pallas_src>
import jax
import jax.numpy as jnp
from jax.experimental import pallas as pl
from jax.experimental.pallas import tpu as pltpu

_INPUT_SIZE = 28 * 28     # 784
_HIDDEN_SIZE = 512
_OUTPUT_SIZE = 10

_OUT_PAD = 128            # lane-dense output slab; first 10 lanes are valid
_MAX_TILE_B = 2048        # batch-tile cap (multiple of 8); ~28 MiB VMEM footprint


def _round_up(n, m):
    return ((n + m - 1) // m) * m


def _mlp_kernel(x_ref, w1_ref, b1_ref, w2_ref, b2_ref, w3_ref, b3_ref, o_ref):
    # In-kernel f32 -> bf16 cast of the activations (VPU work, hidden under MXU).
    x_bf = x_ref[...].astype(jnp.bfloat16)
    # Layer 1: (TB, 784)bf16 @ (784, 512)bf16 -> f32 accumulator; bias + ReLU in f32.
    h1 = jnp.dot(x_bf, w1_ref[...], preferred_element_type=jnp.float32)
    h1 = jnp.maximum(h1 + b1_ref[...], 0.0)
    # Layer 2: cast activations to bf16 for the MXU, keep f32 accumulation.
    h2 = jnp.dot(h1.astype(jnp.bfloat16), w2_ref[...],
                 preferred_element_type=jnp.float32)
    h2 = jnp.maximum(h2 + b2_ref[...], 0.0)
    # Layer 3: output padded to 128 lanes (padded weight columns / bias are zero).
    out = jnp.dot(h2.astype(jnp.bfloat16), w3_ref[...],
                  preferred_element_type=jnp.float32)
    out = jnp.maximum(out + b3_ref[...], 0.0)
    o_ref[...] = out.astype(o_ref.dtype)


def init_params(key):
    """Synthetic init mirroring nn.Linear shapes.

    Weights are stored as (in_features, out_features) = W_pytorch.T so the
    kernel can compute the lane-dense x @ W directly. Returned in f32,
    unpadded; `prepare_params` pads/casts them once for the kernel.
    """
    k1, k2, k3, k4, k5, k6 = jax.random.split(key, 6)

    def linear(kw, kb, fan_in, fan_out):
        bound = 1.0 / jnp.sqrt(fan_in)
        w = jax.random.uniform(kw, (fan_in, fan_out), jnp.float32, -bound, bound)
        bias = jax.random.uniform(kb, (1, fan_out), jnp.float32, -bound, bound)
        return w, bias

    w1, b1 = linear(k1, k2, _INPUT_SIZE, _HIDDEN_SIZE)
    w2, b2 = linear(k3, k4, _HIDDEN_SIZE, _HIDDEN_SIZE)
    w3, b3 = linear(k5, k6, _HIDDEN_SIZE, _OUTPUT_SIZE)
    return (w1, b1, w2, b2, w3, b3)


def prepare_params(params):
    """One-time bf16 cast (+ output-column pad) of the weights for the kernel."""
    w1, b1, w2, b2, w3, b3 = params
    w1p = w1.astype(jnp.bfloat16)                                  # (784, 512)
    w2p = w2.astype(jnp.bfloat16)                                  # (512, 512)
    w3p = jnp.pad(w3, ((0, 0), (0, _OUT_PAD - _OUTPUT_SIZE))).astype(jnp.bfloat16)
    b1p = b1.astype(jnp.float32).reshape(1, _HIDDEN_SIZE)
    b2p = b2.astype(jnp.float32).reshape(1, _HIDDEN_SIZE)
    b3p = jnp.pad(b3.astype(jnp.float32).reshape(1, _OUTPUT_SIZE),
                  ((0, 0), (0, _OUT_PAD - _OUTPUT_SIZE)))
    return (w1p, b1p, w2p, b2p, w3p, b3p)


def neural_network_forward(x, prepared_params):
    """x: (B, 1, 28, 28) or (B, 28, 28) float32 (PyTorch NCHW convention)."""
    w1, b1, w2, b2, w3, b3 = prepared_params

    b = x.shape[0]
    x_flat = x.reshape(b, -1).astype(jnp.float32)     # nn.Flatten: keep batch dim
    assert x_flat.shape[1] == _INPUT_SIZE

    # Batch tiling:
    #  * tile_b multiple of 8 (sublane granule), capped at _MAX_TILE_B,
    #  * capped at ceil(B/2) so there are >=2 grid steps whenever B > 8
    #    (pipelining + v7x dual-TensorCore split),
    #  * no padding of B: grid = cdiv(B, tile_b) and Pallas masks the
    #    partial last block (rows are independent, so garbage OOB rows are
    #    simply dropped on store).
    if b <= 8:
        tile_b = b                                   # single full-extent block
    else:
        tile_b = min(_MAX_TILE_B, _round_up(pl.cdiv(b, 2), 8))
    grid = (pl.cdiv(b, tile_b),)

    flops = 2 * b * (_INPUT_SIZE * _HIDDEN_SIZE
                     + _HIDDEN_SIZE * _HIDDEN_SIZE
                     + _HIDDEN_SIZE * _OUT_PAD)
    bytes_accessed = (x_flat.size * 4
                      + (w1.size + w2.size + w3.size) * 2
                      + (b1.size + b2.size + b3.size) * 4
                      + b * _OUT_PAD * 2)

    out = pl.pallas_call(
        _mlp_kernel,
        out_shape=jax.ShapeDtypeStruct((b, _OUT_PAD), jnp.bfloat16),
        grid_spec=pltpu.PrefetchScalarGridSpec(
            num_scalar_prefetch=0,
            grid=grid,
            in_specs=[
                pl.BlockSpec((tile_b, _INPUT_SIZE), lambda i: (i, 0)),       # x tile (f32)
                pl.BlockSpec((_INPUT_SIZE, _HIDDEN_SIZE), lambda i: (0, 0)),  # w1 (resident)
                pl.BlockSpec((1, _HIDDEN_SIZE), lambda i: (0, 0)),            # b1
                pl.BlockSpec((_HIDDEN_SIZE, _HIDDEN_SIZE), lambda i: (0, 0)),  # w2
                pl.BlockSpec((1, _HIDDEN_SIZE), lambda i: (0, 0)),            # b2
                pl.BlockSpec((_HIDDEN_SIZE, _OUT_PAD), lambda i: (0, 0)),     # w3
                pl.BlockSpec((1, _OUT_PAD), lambda i: (0, 0)),                # b3
            ],
            out_specs=pl.BlockSpec((tile_b, _OUT_PAD), lambda i: (i, 0)),
        ),
        compiler_params=pltpu.CompilerParams(
            dimension_semantics=("parallel",),
            vmem_limit_bytes=48 * 1024 * 1024),
        cost_estimate=pl.CostEstimate(flops=flops, transcendentals=0,
                                      bytes_accessed=bytes_accessed),
    )(x_flat, w1, b1, w2, b2, w3, b3)

    # Strip the lane padding of the output slab; return f32 like the reference.
    return out[:, :_OUTPUT_SIZE].astype(jnp.float32)


def _reference_f32(x, params):
    w1, b1, w2, b2, w3, b3 = params
    h = x.reshape(x.shape[0], -1)
    h = jnp.maximum(h @ w1 + b1, 0.0)
    h = jnp.maximum(h @ w2 + b2, 0.0)
    return jnp.maximum(h @ w3 + b3, 0.0)


def _reference_bf16(x, params):
    # Matches the kernel's numerics: bf16 matmul inputs, f32 accumulation,
    # f32 bias + ReLU, final result rounded through bf16 (kernel output dtype).
    w1, b1, w2, b2, w3, b3 = params
    bf = jnp.bfloat16
    h = x.reshape(x.shape[0], -1)
    h = jnp.maximum(jnp.dot(h.astype(bf), w1.astype(bf),
                            preferred_element_type=jnp.float32) + b1, 0.0)
    h = jnp.maximum(jnp.dot(h.astype(bf), w2.astype(bf),
                            preferred_element_type=jnp.float32) + b2, 0.0)
    out = jnp.maximum(jnp.dot(h.astype(bf), w3.astype(bf),
                              preferred_element_type=jnp.float32) + b3, 0.0)
    return out.astype(bf).astype(jnp.float32)


if __name__ == "__main__":
    key = jax.random.PRNGKey(0)
    k_params, k_x = jax.random.split(key)

    params = init_params(k_params)
    prepared = prepare_params(params)

    # Small batch, MNIST-like NCHW input (B, 1, 28, 28).
    x = jax.random.normal(k_x, (2, 1, 28, 28), dtype=jnp.float32)

    fwd = jax.jit(neural_network_forward)
    out = jax.block_until_ready(fwd(x, prepared))
    assert out.shape == (2, _OUTPUT_SIZE)

    # Tight check against a bf16-matched reference (same arithmetic as kernel).
    ref_bf16 = _reference_bf16(x, params)
    assert jnp.allclose(out, ref_bf16, atol=1e-2, rtol=1e-2), (
        float(jnp.max(jnp.abs(out - ref_bf16))))

    # Loose check against the exact f32 PyTorch-equivalent reference.
    ref_f32 = _reference_f32(x, params)
    assert jnp.allclose(out, ref_f32, atol=5e-2, rtol=5e-2), (
        float(jnp.max(jnp.abs(out - ref_f32))))

    print("KERNEL_OK")
</pallas_src>

<mosaic_0001>
module attributes {stable_mosaic.version = 11 : i64} {
  func.func @_mlp_kernel(%arg0: i32, %arg1: memref<2x784xf32, #tpu.memory_space<vmem>>, %arg2: memref<784x512xbf16, #tpu.memory_space<vmem>>, %arg3: memref<1x512xf32, #tpu.memory_space<vmem>>, %arg4: memref<512x512xbf16, #tpu.memory_space<vmem>>, %arg5: memref<1x512xf32, #tpu.memory_space<vmem>>, %arg6: memref<512x128xbf16, #tpu.memory_space<vmem>>, %arg7: memref<1x128xf32, #tpu.memory_space<vmem>>, %arg8: memref<2x128xbf16, #tpu.memory_space<vmem>>) attributes {dimension_semantics = [#tpu.dimension_semantics<parallel>], iteration_bounds = array<i64: 1>, scalar_prefetch = 0 : i64, scratch_operands = 0 : i64, tpu.core_type = #tpu.core_type<tc>, window_params = [{transform_indices = @transform_0, window_bounds = array<i64: 2, 784>}, {pipeline_mode = #tpu.pipeline_mode<synchronous>, transform_indices = @transform_1, window_bounds = array<i64: 784, 512>}, {pipeline_mode = #tpu.pipeline_mode<synchronous>, transform_indices = @transform_2, window_bounds = array<i64: 1, 512>}, {pipeline_mode = #tpu.pipeline_mode<synchronous>, transform_indices = @transform_3, window_bounds = array<i64: 512, 512>}, {pipeline_mode = #tpu.pipeline_mode<synchronous>, transform_indices = @transform_4, window_bounds = array<i64: 1, 512>}, {pipeline_mode = #tpu.pipeline_mode<synchronous>, transform_indices = @transform_5, window_bounds = array<i64: 512, 128>}, {pipeline_mode = #tpu.pipeline_mode<synchronous>, transform_indices = @transform_6, window_bounds = array<i64: 1, 128>}, {transform_indices = @transform_7, window_bounds = array<i64: 2, 128>}]} {
    %c0 = arith.constant 0 : index
    %c0_0 = arith.constant 0 : index
    %0 = vector.load %arg1[%c0, %c0_0] : memref<2x784xf32, #tpu.memory_space<vmem>>, vector<2x784xf32>
    %1 = arith.truncf %0 : vector<2x784xf32> to vector<2x784xbf16>
    %c0_1 = arith.constant 0 : index
    %c0_2 = arith.constant 0 : index
    %2 = vector.load %arg2[%c0_1, %c0_2] : memref<784x512xbf16, #tpu.memory_space<vmem>>, vector<784x512xbf16>
    %cst = arith.constant dense<0.000000e+00> : vector<2x512xf32>
    %3 = tpu.matmul %1, %2, %cst {dimension_numbers = #tpu.dot_dimension_numbers<[1], [0], [0], [1], [0, 0, 1, 1], [], []>} : vector<2x784xbf16>, vector<784x512xbf16>, vector<2x512xf32> -> vector<2x512xf32>
    %c0_3 = arith.constant 0 : index
    %c0_4 = arith.constant 0 : index
    %4 = vector.load %arg3[%c0_3, %c0_4] : memref<1x512xf32, #tpu.memory_space<vmem>>, vector<1x512xf32>
    %5 = vector.broadcast %4 : vector<1x512xf32> to vector<2x512xf32>
    %6 = arith.addf %3, %5 : vector<2x512xf32>
    %cst_5 = arith.constant 0.000000e+00 : f32
    %7 = vector.broadcast %cst_5 : f32 to vector<2x512xf32>
    %8 = arith.maximumf %6, %7 : vector<2x512xf32>
    %9 = arith.truncf %8 : vector<2x512xf32> to vector<2x512xbf16>
    %c0_6 = arith.constant 0 : index
    %c0_7 = arith.constant 0 : index
    %10 = vector.load %arg4[%c0_6, %c0_7] : memref<512x512xbf16, #tpu.memory_space<vmem>>, vector<512x512xbf16>
    %cst_8 = arith.constant dense<0.000000e+00> : vector<2x512xf32>
    %11 = tpu.matmul %9, %10, %cst_8 {dimension_numbers = #tpu.dot_dimension_numbers<[1], [0], [0], [1], [0, 0, 1, 1], [], []>} : vector<2x512xbf16>, vector<512x512xbf16>, vector<2x512xf32> -> vector<2x512xf32>
    %c0_9 = arith.constant 0 : index
    %c0_10 = arith.constant 0 : index
    %12 = vector.load %arg5[%c0_9, %c0_10] : memref<1x512xf32, #tpu.memory_space<vmem>>, vector<1x512xf32>
    %13 = vector.broadcast %12 : vector<1x512xf32> to vector<2x512xf32>
    %14 = arith.addf %11, %13 : vector<2x512xf32>
    %cst_11 = arith.constant 0.000000e+00 : f32
    %15 = vector.broadcast %cst_11 : f32 to vector<2x512xf32>
    %16 = arith.maximumf %14, %15 : vector<2x512xf32>
    %17 = arith.truncf %16 : vector<2x512xf32> to vector<2x512xbf16>
    %c0_12 = arith.constant 0 : index
    %c0_13 = arith.constant 0 : index
    %18 = vector.load %arg6[%c0_12, %c0_13] : memref<512x128xbf16, #tpu.memory_space<vmem>>, vector<512x128xbf16>
    %cst_14 = arith.constant dense<0.000000e+00> : vector<2x128xf32>
    %19 = tpu.matmul %17, %18, %cst_14 {dimension_numbers = #tpu.dot_dimension_numbers<[1], [0], [0], [1], [0, 0, 1, 1], [], []>} : vector<2x512xbf16>, vector<512x128xbf16>, vector<2x128xf32> -> vector<2x128xf32>
    %c0_15 = arith.constant 0 : index
    %c0_16 = arith.constant 0 : index
    %20 = vector.load %arg7[%c0_15, %c0_16] : memref<1x128xf32, #tpu.memory_space<vmem>>, vector<1x128xf32>
    %21 = vector.broadcast %20 : vector<1x128xf32> to vector<2x128xf32>
    %22 = arith.addf %19, %21 : vector<2x128xf32>
    %cst_17 = arith.constant 0.000000e+00 : f32
    %23 = vector.broadcast %cst_17 : f32 to vector<2x128xf32>
    %24 = arith.maximumf %22, %23 : vector<2x128xf32>
    %25 = arith.truncf %24 : vector<2x128xf32> to vector<2x128xbf16>
    %c0_18 = arith.constant 0 : index
    %c0_19 = arith.constant 0 : index
    %26 = vector.load %arg8[%c0_18, %c0_19] : memref<2x128xbf16, #tpu.memory_space<vmem>>, vector<2x128xbf16>
    tpu.vector_store %arg8[%c0_18, %c0_19], %25 {strides = array<i32>} : memref<2x128xbf16, #tpu.memory_space<vmem>>, vector<2x128xbf16>,
    return
  }
  func.func @transform_0(%arg0: i32) -> (i32, i32) {
    %c0_i32 = arith.constant 0 : i32
    %c0_i32_0 = arith.constant 0 : i32
    return %arg0, %c0_i32 : i32, i32
  }
  func.func @transform_1(%arg0: i32) -> (i32, i32) {
    %c0_i32 = arith.constant 0 : i32
    %c0_i32_0 = arith.constant 0 : i32
    %c0_i32_1 = arith.constant 0 : i32
    return %c0_i32, %c0_i32_0 : i32, i32
  }
  func.func @transform_2(%arg0: i32) -> (i32, i32) {
    %c0_i32 = arith.constant 0 : i32
    %c0_i32_0 = arith.constant 0 : i32
    %c0_i32_1 = arith.constant 0 : i32
    return %c0_i32, %c0_i32_0 : i32, i32
  }
  func.func @transform_3(%arg0: i32) -> (i32, i32) {
    %c0_i32 = arith.constant 0 : i32
    %c0_i32_0 = arith.constant 0 : i32
    %c0_i32_1 = arith.constant 0 : i32
    return %c0_i32, %c0_i32_0 : i32, i32
  }
  func.func @transform_4(%arg0: i32) -> (i32, i32) {
    %c0_i32 = arith.constant 0 : i32
    %c0_i32_0 = arith.constant 0 : i32
    %c0_i32_1 = arith.constant 0 : i32
    return %c0_i32, %c0_i32_0 : i32, i32
  }
  func.func @transform_5(%arg0: i32) -> (i32, i32) {
    %c0_i32 = arith.constant 0 : i32
    %c0_i32_0 = arith.constant 0 : i32
    %c0_i32_1 = arith.constant 0 : i32
    return %c0_i32, %c0_i32_0 : i32, i32
  }
  func.func @transform_6(%arg0: i32) -> (i32, i32) {
    %c0_i32 = arith.constant 0 : i32
    %c0_i32_0 = arith.constant 0 : i32
    %c0_i32_1 = arith.constant 0 : i32
    return %c0_i32, %c0_i32_0 : i32, i32
  }
  func.func @transform_7(%arg0: i32) -> (i32, i32) {
    %c0_i32 = arith.constant 0 : i32
    %c0_i32_0 = arith.constant 0 : i32
    return %arg0, %c0_i32 : i32, i32
  }
}

</mosaic_0001>

<llo_original>
// kernel: neural_network_forward.1
$region0: #{neural_network_forward.1}
  #allocation0 [shape = 'u32[]', space=smem, size = 0x4, offset = 0x4, fixed_abs, tag = 'smem constant byte address 0x4 - core index']
  #allocation1 [shape = 'u32[144,128]{1,0:T(1,128)}', space=vmem, size = 0x12000, scoped, tag = 'internal scratch']
  %s0 = inlined_call_operand.vmem [shape: f32[2,784], index: 0, kind: input, shape index: {}]
  %s1 = inlined_call_operand.hbm [shape: bf16[784,512], index: 1, kind: input, shape index: {}]
  %s2 = inlined_call_operand.vmem [shape: f32[1,512], index: 2, kind: input, shape index: {}]
  %s3 = inlined_call_operand.hbm [shape: bf16[512,512], index: 3, kind: input, shape index: {}]
  %s4 = inlined_call_operand.vmem [shape: f32[1,512], index: 4, kind: input, shape index: {}]
  %s5 = inlined_call_operand.hbm [shape: bf16[512,128], index: 5, kind: input, shape index: {}]
  %s6 = inlined_call_operand.vmem [shape: f32[1,128], index: 6, kind: input, shape index: {}]
  %s7 = inlined_call_operand.vmem [shape: bf16[2,128], index: 7, kind: output, shape index: {}]
  %s8 = sld [smem:[#allocation0]]
  $region50: #{neural_network_forward.1} parent=0
    _
  %s10 = ssub.s32 1, %s8
  %s11 = scalar_select 0, %s10, %s8
  $region1: #{neural_network_forward.1} parent=0
    #allocation2 [shape = 'u8[802816]{0}', space=vmem, size = 0xc4000, scoped, tag = 'input window, operand 1, single buffered']
    #allocation3 [shape = 's32[1]{0}', space=sflag, size = 0x4, scoped, tag = 'scoped memory for neural_network_forward.1']
    #allocation4 [shape = 'u8[524288]{0}', space=vmem, size = 0x80000, scoped, tag = 'input window, operand 3, single buffered']
    #allocation5 [shape = 's32[1]{0}', space=sflag, size = 0x4, scoped, tag = 'scoped memory for neural_network_forward.1']
    #allocation6 [shape = 'u8[131072]{0}', space=vmem, size = 0x20000, scoped, tag = 'input window, operand 5, single buffered']
    %12 = vsyncpa [#allocation3], 0
    %13 = vsyncpa [#allocation5], 0
    // Predicated region
    $region2: #{neural_network_forward.1} parent=1 // pred_check
      _
    $region3: #{neural_network_forward.1} parent=1 // pred_check_branch
      %15 = sbr.rel (0) target = $region5
    $region4: #{neural_network_forward.1} parent=1 // pred_region
      _
    $region5: #{neural_network_forward.1} parent=1 // pred_fallthru
      _
    // Predicated region
    $region6: #{neural_network_forward.1} parent=1 // pred_check
      _
    $region7: #{neural_network_forward.1} parent=1 // pred_check_branch
      %17 = sbr.rel (0) target = $region9
    $region8: #{neural_network_forward.1} parent=1 // pred_region
      %s19 = ssub.s32 25088, 25088
      %20 = vsyncadd [#allocation3], %s19
      %s21 = sshll.u32 [#allocation2], 4
      %s22 = int_to_ptr.vmem [resolvable:$true] %s21
      %27 = dma.hbm_to_vmem [thread:$0]  %s1, 25088, %s22, [#allocation3], 256, 256, 16
    $region9: #{neural_network_forward.1} parent=1 // pred_fallthru
      _
    // Predicated region
    $region10: #{neural_network_forward.1} parent=1 // pred_check
      _
    $region11: #{neural_network_forward.1} parent=1 // pred_check_branch
      %29 = sbr.rel (0) target = $region13
    $region12: #{neural_network_forward.1} parent=1 // pred_region
      _
    $region13: #{neural_network_forward.1} parent=1 // pred_fallthru
      _
    // Predicated region
    $region14: #{neural_network_forward.1} parent=1 // pred_check
      _
    $region15: #{neural_network_forward.1} parent=1 // pred_check_branch
      %31 = sbr.rel (0) target = $region17
    $region16: #{neural_network_forward.1} parent=1 // pred_region
      %s33 = ssub.s32 16384, 16384
      %34 = vsyncadd [#allocation5], %s33
      %s35 = sshll.u32 [#allocation4], 4
      %s36 = int_to_ptr.vmem [resolvable:$true] %s35
      %41 = dma.hbm_to_vmem [thread:$0]  %s3, 16384, %s36, [#allocation5], 256, 256, 16
    $region17: #{neural_network_forward.1} parent=1 // pred_fallthru
      _
    // Predicated region
    $region18: #{neural_network_forward.1} parent=1 // pred_check
      _
    $region19: #{neural_network_forward.1} parent=1 // pred_check_branch
      %43 = sbr.rel (0) target = $region21
    $region20: #{neural_network_forward.1} parent=1 // pred_region
      _
    $region21: #{neural_network_forward.1} parent=1 // pred_fallthru
      _
    // Predicated region
    $region22: #{neural_network_forward.1} parent=1 // pred_check
      _
    $region23: #{neural_network_forward.1} parent=1 // pred_check_branch
      %45 = sbr.rel (0) target = $region25
    $region24: #{neural_network_forward.1} parent=1 // pred_region
      %s47 = ssub.s32 4096, 4096
      %48 = vsyncadd [#allocation5], %s47
      %s49 = sshll.u32 [#allocation6], 4
      %s50 = int_to_ptr.vmem [resolvable:$true] %s49
      %55 = dma.hbm_to_vmem [thread:$0]  %s5, 4096, %s50, [#allocation5], 64, 64, 4
    $region25: #{neural_network_forward.1} parent=1 // pred_fallthru
      _
    // Predicated region
    $region26: #{neural_network_forward.1} parent=1 // pred_check
      _
    $region27: #{neural_network_forward.1} parent=1 // pred_check_branch
      %57 = sbr.rel (0) target = $region29
    $region28: #{neural_network_forward.1} parent=1 // pred_region
      _
    $region29: #{neural_network_forward.1} parent=1 // pred_fallthru
      _
    // Predicated region
    $region30: #{neural_network_forward.1} parent=1 // pred_check
      _
    $region31: #{neural_network_forward.1} parent=1 // pred_check_branch
      %59 = sbr.rel (0) target = $region33
    $region32: #{neural_network_forward.1} parent=1 // pred_region
      %60 = dma.done [#allocation3], 25088
    $region33: #{neural_network_forward.1} parent=1 // pred_fallthru
      _
    // Predicated region
    $region34: #{neural_network_forward.1} parent=1 // pred_check
      _
    $region35: #{neural_network_forward.1} parent=1 // pred_check_branch
      %62 = sbr.rel (0) target = $region37
    $region36: #{neural_network_forward.1} parent=1 // pred_region
      %63 = dma.done [#allocation5], 16384
    $region37: #{neural_network_forward.1} parent=1 // pred_fallthru
      _
    // Predicated region
    $region38: #{neural_network_forward.1} parent=1 // pred_check
      _
    $region39: #{neural_network_forward.1} parent=1 // pred_check_branch
      %65 = sbr.rel (0) target = $region41
    $region40: #{neural_network_forward.1} parent=1 // pred_region
      %66 = dma.done [#allocation5], 4096
    $region41: #{neural_network_forward.1} parent=1 // pred_fallthru
      _
    %v68 = vld [vmem:[%s0] sm:$0xff]
    %v69 = vld [vmem:[%s0 + $0x8] sm:$0x3f]
    %v72 = vcombine.high %v68, %v68
    %v74 = vunpack.c.l.s4 1983009808
    %v75 = vunpack.c.0.s8 %v74
    %v76 = vlaneseq
    %v77 = vshrl.u32 %v76, 7
    %v78 = vsub.s32 %v75, %v77
    %v79 = vrot.slane %v68, %v78
    %v81 = vunpack.c.l.s4 1983009808
    %v82 = vunpack.c.0.s8 %v81
    %v83 = vlaneseq
    %v84 = vshrl.u32 %v83, 7
    %v85 = vsub.s32 %v82, %v84
    %v86 = vrot.slane %v72, %v85
    %v87 = vcombine.high %v79, %v79
    %v88 = vcombine.high %v86, %v86
    %v89 = vcombine.high %v69, %v69
    %v91 = vunpack.c.l.s4 1983009808
    %v92 = vunpack.c.0.s8 %v91
    %v93 = vlaneseq
    %v94 = vshrl.u32 %v93, 7
    %v95 = vsub.s32 %v92, %v94
    %v96 = vrot.slane %v69, %v95
    %v98 = vunpack.c.l.s4 1983009808
    %v99 = vunpack.c.0.s8 %v98
    %v100 = vlaneseq
    %v101 = vshrl.u32 %v100, 7
    %v102 = vsub.s32 %v99, %v101
    %v103 = vrot.slane %v89, %v102
    %v104 = vcombine.high %v96, %v96
    %v112 = vpack.c.bf16 %v79, %v79
    %v113 = vpack.c.bf16 %v87, %v87
    %v114 = vpack.c.bf16 %v86, %v86
    %v115 = vpack.c.bf16 %v88, %v88
    %v116 = vpack.c.bf16 %v96, %v96
    %v117 = vpack.c.bf16 %v104, %v104
    %v118 = vpack.c.bf16 %v103, %v103
    %v119 = vld [vmem:[#allocation2] sm:$0xff]
    %v120 = vld [vmem:[#allocation2 + $0x8] sm:$0xff]
    %v121 = vld [vmem:[#allocation2 + $0x10] sm:$0xff]
    %v122 = vld [vmem:[#allocation2 + $0x18] sm:$0xff]
    %v123 = vld [vmem:[#allocation2 + $0x20] sm:$0xff]
    %v124 = vld [vmem:[#allocation2 + $0x28] sm:$0xff]
    %v125 = vld [vmem:[#allocation2 + $0x30] sm:$0xff]
    %v126 = vld [vmem:[#allocation2 + $0x38] sm:$0xff]
    %v127 = vld [vmem:[#allocation2 + $0x40] sm:$0xff]
    %v128 = vld [vmem:[#allocation2 + $0x48] sm:$0xff]
    %v129 = vld [vmem:[#allocation2 + $0x50] sm:$0xff]
    %v130 = vld [vmem:[#allocation2 + $0x58] sm:$0xff]
    %v131 = vld [vmem:[#allocation2 + $0x60] sm:$0xff]
    %v132 = vld [vmem:[#allocation2 + $0x68] sm:$0xff]
    %v133 = vld [vmem:[#allocation2 + $0x70] sm:$0xff]
    %v134 = vld [vmem:[#allocation2 + $0x78] sm:$0xff]
    %v135 = vld [vmem:[#allocation2 + $0x80] sm:$0xff]
    %v136 = vld [vmem:[#allocation2 + $0x88] sm:$0xff]
    %v137 = vld [vmem:[#allocation2 + $0x90] sm:$0xff]
    %v138 = vld [vmem:[#allocation2 + $0x98] sm:$0xff]
    %v139 = vld [vmem:[#allocation2 + $0xa0] sm:$0xff]
    %v140 = vld [vmem:[#allocation2 + $0xa8] sm:$0xff]
    %v141 = vld [vmem:[#allocation2 + $0xb0] sm:$0xff]
    %v142 = vld [vmem:[#allocation2 + $0xb8] sm:$0xff]
    %v143 = vld [vmem:[#allocation2 + $0xc0] sm:$0xff]
    %v144 = vld [vmem:[#allocation2 + $0xc8] sm:$0xff]
    %v145 = vld [vmem:[#allocation2 + $0xd0] sm:$0xff]
    %v146 = vld [vmem:[#allocation2 + $0xd8] sm:$0xff]
    %v147 = vld [vmem:[#allocation2 + $0xe0] sm:$0xff]
    %v148 = vld [vmem:[#allocation2 + $0xe8] sm:$0xff]
    %v149 = vld [vmem:[#allocation2 + $0xf0] sm:$0xff]
    %v150 = vld [vmem:[#allocation2 + $0xf8] sm:$0xff]
    %v151 = vld [vmem:[#allocation2 + $0x100] sm:$0xff]
    %v152 = vld [vmem:[#allocation2 + $0x108] sm:$0xff]
    %v153 = vld [vmem:[#allocation2 + $0x110] sm:$0xff]
    %v154 = vld [vmem:[#allocation2 + $0x118] sm:$0xff]
    %v155 = vld [vmem:[#allocation2 + $0x120] sm:$0xff]
    %v156 = vld [vmem:[#allocation2 + $0x128] sm:$0xff]
    %v157 = vld [vmem:[#allocation2 + $0x130] sm:$0xff]
    %v158 = vld [vmem:[#allocation2 + $0x138] sm:$0xff]
    %v159 = vld [vmem:[#allocation2 + $0x140] sm:$0xff]
    %v160 = vld [vmem:[#allocation2 + $0x148] sm:$0xff]
    %v161 = vld [vmem:[#allocation2 + $0x150] sm:$0xff]
    %v162 = vld [vmem:[#allocation2 + $0x158] sm:$0xff]
    %v163 = vld [vmem:[#allocation2 + $0x160] sm:$0xff]
    %v164 = vld [vmem:[#allocation2 + $0x168] sm:$0xff]
    %v165 = vld [vmem:[#allocation2 + $0x170] sm:$0xff]
    %v166 = vld [vmem:[#allocation2 + $0x178] sm:$0xff]
    %v167 = vld [vmem:[#allocation2 + $0x180] sm:$0xff]
    %v168 = vld [vmem:[#allocation2 + $0x188] sm:$0xff]
    %v169 = vld [vmem:[#allocation2 + $0x190] sm:$0xff]
    %v170 = vld [vmem:[#allocation2 + $0x198] sm:$0xff]
    %v171 = vld [vmem:[#allocation2 + $0x1a0] sm:$0xff]
    %v172 = vld [vmem:[#allocation2 + $0x1a8] sm:$0xff]
    %v173 = vld [vmem:[#allocation2 + $0x1b0] sm:$0xff]
    %v174 = vld [vmem:[#allocation2 + $0x1b8] sm:$0xff]
    %v175 = vld [vmem:[#allocation2 + $0x1c0] sm:$0xff]
    %v176 = vld [vmem:[#allocation2 + $0x1c8] sm:$0xff]
    %v177 = vld [vmem:[#allocation2 + $0x1d0] sm:$0xff]
    %v178 = vld [vmem:[#allocation2 + $0x1d8] sm:$0xff]
    %v179 = vld [vmem:[#allocation2 + $0x1e0] sm:$0xff]
    %v180 = vld [vmem:[#allocation2 + $0x1e8] sm:$0xff]
    %v181 = vld [vmem:[#allocation2 + $0x1f0] sm:$0xff]
    %v182 = vld [vmem:[#allocation2 + $0x1f8] sm:$0xff]
    %v183 = vld [vmem:[#allocation2 + $0x200] sm:$0xff]
    %v184 = vld [vmem:[#allocation2 + $0x208] sm:$0xff]
    %v185 = vld [vmem:[#allocation2 + $0x210] sm:$0xff]
    %v186 = vld [vmem:[#allocation2 + $0x218] sm:$0xff]
    %v187 = vld [vmem:[#allocation2 + $0x220] sm:$0xff]
    %v188 = vld [vmem:[#allocation2 + $0x228] sm:$0xff]
    %v189 = vld [vmem:[#allocation2 + $0x230] sm:$0xff]
    %v190 = vld [vmem:[#allocation2 + $0x238] sm:$0xff]
    %v191 = vld [vmem:[#allocation2 + $0x240] sm:$0xff]
    %v192 = vld [vmem:[#allocation2 + $0x248] sm:$0xff]
    %v193 = vld [vmem:[#allocation2 + $0x250] sm:$0xff]
    %v194 = vld [vmem:[#allocation2 + $0x258] sm:$0xff]
    %v195 = vld [vmem:[#allocation2 + $0x260] sm:$0xff]
    %v196 = vld [vmem:[#allocation2 + $0x268] sm:$0xff]
    %v197 = vld [vmem:[#allocation2 + $0x270] sm:$0xff]
    %v198 = vld [vmem:[#allocation2 + $0x278] sm:$0xff]
    %v199 = vld [vmem:[#allocation2 + $0x280] sm:$0xff]
    %v200 = vld [vmem:[#allocation2 + $0x288] sm:$0xff]
    %v201 = vld [vmem:[#allocation2 + $0x290] sm:$0xff]
    %v202 = vld [vmem:[#allocation2 + $0x298] sm:$0xff]
    %v203 = vld [vmem:[#allocation2 + $0x2a0] sm:$0xff]
    %v204 = vld [vmem:[#allocation2 + $0x2a8] sm:$0xff]
    %v205 = vld [vmem:[#allocation2 + $0x2b0] sm:$0xff]
    %v206 = vld [vmem:[#allocation2 + $0x2b8] sm:$0xff]
    %v207 = vld [vmem:[#allocation2 + $0x2c0] sm:$0xff]
    %v208 = vld [vmem:[#allocation2 + $0x2c8] sm:$0xff]
    %v209 = vld [vmem:[#allocation2 + $0x2d0] sm:$0xff]
    %v210 = vld [vmem:[#allocation2 + $0x2d8] sm:$0xff]
    %v211 = vld [vmem:[#allocation2 + $0x2e0] sm:$0xff]
    %v212 = vld [vmem:[#allocation2 + $0x2e8] sm:$0xff]
    %v213 = vld [vmem:[#allocation2 + $0x2f0] sm:$0xff]
    %v214 = vld [vmem:[#allocation2 + $0x2f8] sm:$0xff]
    %v215 = vld [vmem:[#allocation2 + $0x300] sm:$0xff]
    %v216 = vld [vmem:[#allocation2 + $0x308] sm:$0xff]
    %v217 = vld [vmem:[#allocation2 + $0x310] sm:$0xff]
    %v218 = vld [vmem:[#allocation2 + $0x318] sm:$0xff]
    %v219 = vld [vmem:[#allocation2 + $0x320] sm:$0xff]
    %v220 = vld [vmem:[#allocation2 + $0x328] sm:$0xff]
    %v221 = vld [vmem:[#allocation2 + $0x330] sm:$0xff]
    %v222 = vld [vmem:[#allocation2 + $0x338] sm:$0xff]
    %v223 = vld [vmem:[#allocation2 + $0x340] sm:$0xff]
    %v224 = vld [vmem:[#allocation2 + $0x348] sm:$0xff]
    %v225 = vld [vmem:[#allocation2 + $0x350] sm:$0xff]
    %v226 = vld [vmem:[#allocation2 + $0x358] sm:$0xff]
    %v227 = vld [vmem:[#allocation2 + $0x360] sm:$0xff]
    %v228 = vld [vmem:[#allocation2 + $0x368] sm:$0xff]
    %v229 = vld [vmem:[#allocation2 + $0x370] sm:$0xff]
    %v230 = vld [vmem:[#allocation2 + $0x378] sm:$0xff]
    %v231 = vld [vmem:[#allocation2 + $0x380] sm:$0xff]
    %v232 = vld [vmem:[#allocation2 + $0x388] sm:$0xff]
    %v233 = vld [vmem:[#allocation2 + $0x390] sm:$0xff]
    %v234 = vld [vmem:[#allocation2 + $0x398] sm:$0xff]
    %v235 = vld [vmem:[#allocation2 + $0x3a0] sm:$0xff]
    %v236 = vld [vmem:[#allocation2 + $0x3a8] sm:$0xff]
    %v237 = vld [vmem:[#allocation2 + $0x3b0] sm:$0xff]
    %v238 = vld [vmem:[#allocation2 + $0x3b8] sm:$0xff]
    %v239 = vld [vmem:[#allocation2 + $0x3c0] sm:$0xff]
    %v240 = vld [vmem:[#allocation2 + $0x3c8] sm:$0xff]
    %v241 = vld [vmem:[#allocation2 + $0x3d0] sm:$0xff]
    %v242 = vld [vmem:[#allocation2 + $0x3d8] sm:$0xff]
    %v243 = vld [vmem:[#allocation2 + $0x3e0] sm:$0xff]
    %v244 = vld [vmem:[#allocation2 + $0x3e8] sm:$0xff]
    %v245 = vld [vmem:[#allocation2 + $0x3f0] sm:$0xff]
    %v246 = vld [vmem:[#allocation2 + $0x3f8] sm:$0xff]
    %v247 = vld [vmem:[#allocation2 + $0x400] sm:$0xff]
    %v248 = vld [vmem:[#allocation2 + $0x408] sm:$0xff]
    %v249 = vld [vmem:[#allocation2 + $0x410] sm:$0xff]
    %v250 = vld [vmem:[#allocation2 + $0x418] sm:$0xff]
    %v251 = vld [vmem:[#allocation2 + $0x420] sm:$0xff]
    %v252 = vld [vmem:[#allocation2 + $0x428] sm:$0xff]
    %v253 = vld [vmem:[#allocation2 + $0x430] sm:$0xff]
    %v254 = vld [vmem:[#allocation2 + $0x438] sm:$0xff]
    %v255 = vld [vmem:[#allocation2 + $0x440] sm:$0xff]
    %v256 = vld [vmem:[#allocation2 + $0x448] sm:$0xff]
    %v257 = vld [vmem:[#allocation2 + $0x450] sm:$0xff]
    %v258 = vld [vmem:[#allocation2 + $0x458] sm:$0xff]
    %v259 = vld [vmem:[#allocation2 + $0x460] sm:$0xff]
    %v260 = vld [vmem:[#allocation2 + $0x468] sm:$0xff]
    %v261 = vld [vmem:[#allocation2 + $0x470] sm:$0xff]
    %v262 = vld [vmem:[#allocation2 + $0x478] sm:$0xff]
    %v263 = vld [vmem:[#allocation2 + $0x480] sm:$0xff]
    %v264 = vld [vmem:[#allocation2 + $0x488] sm:$0xff]
    %v265 = vld [vmem:[#allocation2 + $0x490] sm:$0xff]
    %v266 = vld [vmem:[#allocation2 + $0x498] sm:$0xff]
    %v267 = vld [vmem:[#allocation2 + $0x4a0] sm:$0xff]
    %v268 = vld [vmem:[#allocation2 + $0x4a8] sm:$0xff]
    %v269 = vld [vmem:[#allocation2 + $0x4b0] sm:$0xff]
    %v270 = vld [vmem:[#allocation2 + $0x4b8] sm:$0xff]
    %v271 = vld [vmem:[#allocation2 + $0x4c0] sm:$0xff]
    %v272 = vld [vmem:[#allocation2 + $0x4c8] sm:$0xff]
    %v273 = vld [vmem:[#allocation2 + $0x4d0] sm:$0xff]
    %v274 = vld [vmem:[#allocation2 + $0x4d8] sm:$0xff]
    %v275 = vld [vmem:[#allocation2 + $0x4e0] sm:$0xff]
    %v276 = vld [vmem:[#allocation2 + $0x4e8] sm:$0xff]
    %v277 = vld [vmem:[#allocation2 + $0x4f0] sm:$0xff]
    %v278 = vld [vmem:[#allocation2 + $0x4f8] sm:$0xff]
    %v279 = vld [vmem:[#allocation2 + $0x500] sm:$0xff]
    %v280 = vld [vmem:[#allocation2 + $0x508] sm:$0xff]
    %v281 = vld [vmem:[#allocation2 + $0x510] sm:$0xff]
    %v282 = vld [vmem:[#allocation2 + $0x518] sm:$0xff]
    %v283 = vld [vmem:[#allocation2 + $0x520] sm:$0xff]
    %v284 = vld [vmem:[#allocation2 + $0x528] sm:$0xff]
    %v285 = vld [vmem:[#allocation2 + $0x530] sm:$0xff]
    %v286 = vld [vmem:[#allocation2 + $0x538] sm:$0xff]
    %v287 = vld [vmem:[#allocation2 + $0x540] sm:$0xff]
    %v288 = vld [vmem:[#allocation2 + $0x548] sm:$0xff]
    %v289 = vld [vmem:[#allocation2 + $0x550] sm:$0xff]
    %v290 = vld [vmem:[#allocation2 + $0x558] sm:$0xff]
    %v291 = vld [vmem:[#allocation2 + $0x560] sm:$0xff]
    %v292 = vld [vmem:[#allocation2 + $0x568] sm:$0xff]
    %v293 = vld [vmem:[#allocation2 + $0x570] sm:$0xff]
    %v294 = vld [vmem:[#allocation2 + $0x578] sm:$0xff]
    %v295 = vld [vmem:[#allocation2 + $0x580] sm:$0xff]
    %v296 = vld [vmem:[#allocation2 + $0x588] sm:$0xff]
    %v297 = vld [vmem:[#allocation2 + $0x590] sm:$0xff]
    %v298 = vld [vmem:[#allocation2 + $0x598] sm:$0xff]
    %v299 = vld [vmem:[#allocation2 + $0x5a0] sm:$0xff]
    %v300 = vld [vmem:[#allocation2 + $0x5a8] sm:$0xff]
    %v301 = vld [vmem:[#allocation2 + $0x5b0] sm:$0xff]
    %v302 = vld [vmem:[#allocation2 + $0x5b8] sm:$0xff]
    %v303 = vld [vmem:[#allocation2 + $0x5c0] sm:$0xff]
    %v304 = vld [vmem:[#allocation2 + $0x5c8] sm:$0xff]
    %v305 = vld [vmem:[#allocation2 + $0x5d0] sm:$0xff]
    %v306 = vld [vmem:[#allocation2 + $0x5d8] sm:$0xff]
    %v307 = vld [vmem:[#allocation2 + $0x5e0] sm:$0xff]
    %v308 = vld [vmem:[#allocation2 + $0x5e8] sm:$0xff]
    %v309 = vld [vmem:[#allocation2 + $0x5f0] sm:$0xff]
    %v310 = vld [vmem:[#allocation2 + $0x5f8] sm:$0xff]
    %v311 = vld [vmem:[#allocation2 + $0x600] sm:$0xff]
    %v312 = vld [vmem:[#allocation2 + $0x608] sm:$0xff]
    %v313 = vld [vmem:[#allocation2 + $0x610] sm:$0xff]
    %v314 = vld [vmem:[#allocation2 + $0x618] sm:$0xff]
    %v315 = vld [vmem:[%s2] sm:$0xf]
    %v317 = vlaneseq
    %v318 = vshrl.u32 %v317, 7
    %v319 = vsub.s32 0, %v318
    %v320 = vrot.slane %v315, %v319
    %v321 = vlaneseq
    %v322 = vshrl.u32 %v321, 7
    %v323 = vsub.s32 1, %v322
    %v324 = vrot.slane %v315, %v323
    %v325 = vlaneseq
    %v326 = vshrl.u32 %v325, 7
    %v327 = vsub.s32 2, %v326
    %v328 = vrot.slane %v315, %v327
    %v329 = vlaneseq
    %v330 = vshrl.u32 %v329, 7
    %v331 = vsub.s32 3, %v330
    %v332 = vrot.slane %v315, %v331
    %v533 = vunpack.c.l.b16 %v119
    %v534 = vunpack.c.h.b16 %v119
    %v535 = vunpack.c.l.b16 %v120
    %v536 = vunpack.c.h.b16 %v120
    %v537 = vunpack.c.l.b16 %v121
    %v538 = vunpack.c.h.b16 %v121
    %v539 = vunpack.c.l.b16 %v122
    %v540 = vunpack.c.h.b16 %v122
    %v541 = vunpack.c.l.b16 %v123
    %v542 = vunpack.c.h.b16 %v123
    %v543 = vunpack.c.l.b16 %v124
    %v544 = vunpack.c.h.b16 %v124
    %v545 = vunpack.c.l.b16 %v125
    %v546 = vunpack.c.h.b16 %v125
    %v547 = vunpack.c.l.b16 %v126
    %v548 = vunpack.c.h.b16 %v126
    %v549 = vunpack.c.l.b16 %v127
    %v550 = vunpack.c.h.b16 %v127
    %v551 = vunpack.c.l.b16 %v128
    %v552 = vunpack.c.h.b16 %v128
    %v553 = vunpack.c.l.b16 %v129
    %v554 = vunpack.c.h.b16 %v129
    %v555 = vunpack.c.l.b16 %v130
    %v556 = vunpack.c.h.b16 %v130
    %v557 = vunpack.c.l.b16 %v131
    %v558 = vunpack.c.h.b16 %v131
    %v559 = vunpack.c.l.b16 %v132
    %v560 = vunpack.c.h.b16 %v132
    %v561 = vunpack.c.l.b16 %v133
    %v562 = vunpack.c.h.b16 %v133
    %v563 = vunpack.c.l.b16 %v134
    %v564 = vunpack.c.h.b16 %v134
    %v565 = vunpack.c.l.b16 %v135
    %v566 = vunpack.c.h.b16 %v135
    %v567 = vunpack.c.l.b16 %v136
    %v568 = vunpack.c.h.b16 %v136
    %v569 = vunpack.c.l.b16 %v137
    %v570 = vunpack.c.h.b16 %v137
    %v571 = vunpack.c.l.b16 %v138
    %v572 = vunpack.c.h.b16 %v138
    %v573 = vunpack.c.l.b16 %v139
    %v574 = vunpack.c.h.b16 %v139
    %v575 = vunpack.c.l.b16 %v140
    %v576 = vunpack.c.h.b16 %v140
    %v577 = vunpack.c.l.b16 %v141
    %v578 = vunpack.c.h.b16 %v141
    %v579 = vunpack.c.l.b16 %v142
    %v580 = vunpack.c.h.b16 %v142
    %v581 = vunpack.c.l.b16 %v143
    %v582 = vunpack.c.h.b16 %v143
    %v583 = vunpack.c.l.b16 %v144
    %v584 = vunpack.c.h.b16 %v144
    %v585 = vunpack.c.l.b16 %v145
    %v586 = vunpack.c.h.b16 %v145
    %v587 = vunpack.c.l.b16 %v146
    %v588 = vunpack.c.h.b16 %v146
    %v589 = vunpack.c.l.b16 %v147
    %v590 = vunpack.c.h.b16 %v147
    %v591 = vunpack.c.l.b16 %v148
    %v592 = vunpack.c.h.b16 %v148
    %v593 = vunpack.c.l.b16 %v149
    %v594 = vunpack.c.h.b16 %v149
    %v595 = vunpack.c.l.b16 %v150
    %v596 = vunpack.c.h.b16 %v150
    %v597 = vunpack.c.l.b16 %v151
    %v598 = vunpack.c.h.b16 %v151
    %v599 = vunpack.c.l.b16 %v152
    %v600 = vunpack.c.h.b16 %v152
    %v601 = vunpack.c.l.b16 %v153
    %v602 = vunpack.c.h.b16 %v153
    %v603 = vunpack.c.l.b16 %v154
    %v604 = vunpack.c.h.b16 %v154
    %v605 = vunpack.c.l.b16 %v155
    %v606 = vunpack.c.h.b16 %v155
    %v607 = vunpack.c.l.b16 %v156
    %v608 = vunpack.c.h.b16 %v156
    %v609 = vunpack.c.l.b16 %v157
    %v610 = vunpack.c.h.b16 %v157
    %v611 = vunpack.c.l.b16 %v158
    %v612 = vunpack.c.h.b16 %v158
    %v613 = vunpack.c.l.b16 %v159
    %v614 = vunpack.c.h.b16 %v159
    %v615 = vunpack.c.l.b16 %v160
    %v616 = vunpack.c.h.b16 %v160
    %v617 = vunpack.c.l.b16 %v161
    %v618 = vunpack.c.h.b16 %v161
    %v619 = vunpack.c.l.b16 %v162
    %v620 = vunpack.c.h.b16 %v162
    %v621 = vunpack.c.l.b16 %v163
    %v622 = vunpack.c.h.b16 %v163
    %v623 = vunpack.c.l.b16 %v164
    %v624 = vunpack.c.h.b16 %v164
    %v625 = vunpack.c.l.b16 %v165
    %v626 = vunpack.c.h.b16 %v165
    %v627 = vunpack.c.l.b16 %v166
    %v628 = vunpack.c.h.b16 %v166
    %v629 = vunpack.c.l.b16 %v167
    %v630 = vunpack.c.h.b16 %v167
    %v631 = vunpack.c.l.b16 %v168
    %v632 = vunpack.c.h.b16 %v168
    %v633 = vunpack.c.l.b16 %v169
    %v634 = vunpack.c.h.b16 %v169
    %v635 = vunpack.c.l.b16 %v170
    %v636 = vunpack.c.h.b16 %v170
    %v637 = vunpack.c.l.b16 %v171
    %v638 = vunpack.c.h.b16 %v171
    %v639 = vunpack.c.l.b16 %v172
    %v640 = vunpack.c.h.b16 %v172
    %v641 = vunpack.c.l.b16 %v173
    %v642 = vunpack.c.h.b16 %v173
    %v643 = vunpack.c.l.b16 %v174
    %v644 = vunpack.c.h.b16 %v174
    %v645 = vunpack.c.l.b16 %v175
    %v646 = vunpack.c.h.b16 %v175
    %v647 = vunpack.c.l.b16 %v176
    %v648 = vunpack.c.h.b16 %v176
    %v649 = vunpack.c.l.b16 %v177
    %v650 = vunpack.c.h.b16 %v177
    %v651 = vunpack.c.l.b16 %v178
    %v652 = vunpack.c.h.b16 %v178
    %v653 = vunpack.c.l.b16 %v179
    %v654 = vunpack.c.h.b16 %v179
    %v655 = vunpack.c.l.b16 %v180
    %v656 = vunpack.c.h.b16 %v180
    %v657 = vunpack.c.l.b16 %v181
    %v658 = vunpack.c.h.b16 %v181
    %v659 = vunpack.c.l.b16 %v182
    %v660 = vunpack.c.h.b16 %v182
    %v661 = vunpack.c.l.b16 %v183
    %v662 = vunpack.c.h.b16 %v183
    %v663 = vunpack.c.l.b16 %v184
    %v664 = vunpack.c.h.b16 %v184
    %v665 = vunpack.c.l.b16 %v185
    %v666 = vunpack.c.h.b16 %v185
    %v667 = vunpack.c.l.b16 %v186
    %v668 = vunpack.c.h.b16 %v186
    %v669 = vunpack.c.l.b16 %v187
    %v670 = vunpack.c.h.b16 %v187
    %v671 = vunpack.c.l.b16 %v188
    %v672 = vunpack.c.h.b16 %v188
    %v673 = vunpack.c.l.b16 %v189
    %v674 = vunpack.c.h.b16 %v189
    %v675 = vunpack.c.l.b16 %v190
    %v676 = vunpack.c.h.b16 %v190
    %v677 = vunpack.c.l.b16 %v191
    %v678 = vunpack.c.h.b16 %v191
    %v679 = vunpack.c.l.b16 %v192
    %v680 = vunpack.c.h.b16 %v192
    %v681 = vunpack.c.l.b16 %v193
    %v682 = vunpack.c.h.b16 %v193
    %v683 = vunpack.c.l.b16 %v194
    %v684 = vunpack.c.h.b16 %v194
    %v685 = vunpack.c.l.b16 %v195
    %v686 = vunpack.c.h.b16 %v195
    %v687 = vunpack.c.l.b16 %v196
    %v688 = vunpack.c.h.b16 %v196
    %v689 = vunpack.c.l.b16 %v197
    %v690 = vunpack.c.h.b16 %v197
    %v691 = vunpack.c.l.b16 %v198
    %v692 = vunpack.c.h.b16 %v198
    %v693 = vunpack.c.l.b16 %v199
    %v694 = vunpack.c.h.b16 %v199
    %v695 = vunpack.c.l.b16 %v200
    %v696 = vunpack.c.h.b16 %v200
    %v697 = vunpack.c.l.b16 %v201
    %v698 = vunpack.c.h.b16 %v201
    %v699 = vunpack.c.l.b16 %v202
    %v700 = vunpack.c.h.b16 %v202
    %v701 = vunpack.c.l.b16 %v203
    %v702 = vunpack.c.h.b16 %v203
    %v703 = vunpack.c.l.b16 %v204
    %v704 = vunpack.c.h.b16 %v204
    %v705 = vunpack.c.l.b16 %v205
    %v706 = vunpack.c.h.b16 %v205
    %v707 = vunpack.c.l.b16 %v206
    %v708 = vunpack.c.h.b16 %v206
    %v709 = vunpack.c.l.b16 %v207
    %v710 = vunpack.c.h.b16 %v207
    %v711 = vunpack.c.l.b16 %v208
    %v712 = vunpack.c.h.b16 %v208
    %v713 = vunpack.c.l.b16 %v209
    %v714 = vunpack.c.h.b16 %v209
    %v715 = vunpack.c.l.b16 %v210
    %v716 = vunpack.c.h.b16 %v210
    %v717 = vunpack.c.l.b16 %v211
    %v718 = vunpack.c.h.b16 %v211
    %v719 = vunpack.c.l.b16 %v212
    %v720 = vunpack.c.h.b16 %v212
    %v721 = vunpack.c.l.b16 %v213
    %v722 = vunpack.c.h.b16 %v213
    %v723 = vunpack.c.l.b16 %v214
    %v724 = vunpack.c.h.b16 %v214
    %v725 = vunpack.c.l.b16 %v215
    %v726 = vunpack.c.h.b16 %v215
    %v727 = vunpack.c.l.b16 %v216
    %v728 = vunpack.c.h.b16 %v216
    %v729 = vunpack.c.l.b16 %v217
    %v730 = vunpack.c.h.b16 %v217
    %v731 = vunpack.c.l.b16 %v218
    %v732 = vunpack.c.h.b16 %v218
    %v733 = vunpack.c.l.b16 %v219
    %v734 = vunpack.c.h.b16 %v219
    %v735 = vunpack.c.l.b16 %v220
    %v736 = vunpack.c.h.b16 %v220
    %v737 = vunpack.c.l.b16 %v221
    %v738 = vunpack.c.h.b16 %v221
    %v739 = vunpack.c.l.b16 %v222
    %v740 = vunpack.c.h.b16 %v222
    %v741 = vunpack.c.l.b16 %v223
    %v742 = vunpack.c.h.b16 %v223
    %v743 = vunpack.c.l.b16 %v224
    %v744 = vunpack.c.h.b16 %v224
    %v745 = vunpack.c.l.b16 %v225
    %v746 = vunpack.c.h.b16 %v225
    %v747 = vunpack.c.l.b16 %v226
    %v748 = vunpack.c.h.b16 %v226
    %v749 = vunpack.c.l.b16 %v227
    %v750 = vunpack.c.h.b16 %v227
    %v751 = vunpack.c.l.b16 %v228
    %v752 = vunpack.c.h.b16 %v228
    %v753 = vunpack.c.l.b16 %v229
    %v754 = vunpack.c.h.b16 %v229
    %v755 = vunpack.c.l.b16 %v230
    %v756 = vunpack.c.h.b16 %v230
    %v757 = vunpack.c.l.b16 %v231
    %v758 = vunpack.c.h.b16 %v231
    %v759 = vunpack.c.l.b16 %v232
    %v760 = vunpack.c.h.b16 %v232
    %v761 = vunpack.c.l.b16 %v233
    %v762 = vunpack.c.h.b16 %v233
    %v763 = vunpack.c.l.b16 %v234
    %v764 = vunpack.c.h.b16 %v234
    %v765 = vunpack.c.l.b16 %v235
    %v766 = vunpack.c.h.b16 %v235
    %v767 = vunpack.c.l.b16 %v236
    %v768 = vunpack.c.h.b16 %v236
    %v769 = vunpack.c.l.b16 %v237
    %v770 = vunpack.c.h.b16 %v237
    %v771 = vunpack.c.l.b16 %v238
    %v772 = vunpack.c.h.b16 %v238
    %v773 = vunpack.c.l.b16 %v239
    %v774 = vunpack.c.h.b16 %v239
    %v775 = vunpack.c.l.b16 %v240
    %v776 = vunpack.c.h.b16 %v240
    %v777 = vunpack.c.l.b16 %v241
    %v778 = vunpack.c.h.b16 %v241
    %v779 = vunpack.c.l.b16 %v242
    %v780 = vunpack.c.h.b16 %v242
    %v781 = vunpack.c.l.b16 %v243
    %v782 = vunpack.c.h.b16 %v243
    %v783 = vunpack.c.l.b16 %v244
    %v784 = vunpack.c.h.b16 %v244
    %v785 = vunpack.c.l.b16 %v245
    %v786 = vunpack.c.h.b16 %v245
    %v787 = vunpack.c.l.b16 %v246
    %v788 = vunpack.c.h.b16 %v246
    %v789 = vunpack.c.l.b16 %v247
    %v790 = vunpack.c.h.b16 %v247
    %v791 = vunpack.c.l.b16 %v248
    %v792 = vunpack.c.h.b16 %v248
    %v793 = vunpack.c.l.b16 %v249
    %v794 = vunpack.c.h.b16 %v249
    %v795 = vunpack.c.l.b16 %v250
    %v796 = vunpack.c.h.b16 %v250
    %v797 = vunpack.c.l.b16 %v251
    %v798 = vunpack.c.h.b16 %v251
    %v799 = vunpack.c.l.b16 %v252
    %v800 = vunpack.c.h.b16 %v252
    %v801 = vunpack.c.l.b16 %v253
    %v802 = vunpack.c.h.b16 %v253
    %v803 = vunpack.c.l.b16 %v254
    %v804 = vunpack.c.h.b16 %v254
    %v805 = vunpack.c.l.b16 %v255
    %v806 = vunpack.c.h.b16 %v255
    %v807 = vunpack.c.l.b16 %v256
    %v808 = vunpack.c.h.b16 %v256
    %v809 = vunpack.c.l.b16 %v257
    %v810 = vunpack.c.h.b16 %v257
    %v811 = vunpack.c.l.b16 %v258
    %v812 = vunpack.c.h.b16 %v258
    %v813 = vunpack.c.l.b16 %v259
    %v814 = vunpack.c.h.b16 %v259
    %v815 = vunpack.c.l.b16 %v260
    %v816 = vunpack.c.h.b16 %v260
    %v817 = vunpack.c.l.b16 %v261
    %v818 = vunpack.c.h.b16 %v261
    %v819 = vunpack.c.l.b16 %v262
    %v820 = vunpack.c.h.b16 %v262
    %v821 = vunpack.c.l.b16 %v263
    %v822 = vunpack.c.h.b16 %v263
    %v823 = vunpack.c.l.b16 %v264
    %v824 = vunpack.c.h.b16 %v264
    %v825 = vunpack.c.l.b16 %v265
    %v826 = vunpack.c.h.b16 %v265
    %v827 = vunpack.c.l.b16 %v266
    %v828 = vunpack.c.h.b16 %v266
    %v829 = vunpack.c.l.b16 %v267
    %v830 = vunpack.c.h.b16 %v267
    %v831 = vunpack.c.l.b16 %v268
    %v832 = vunpack.c.h.b16 %v268
    %v833 = vunpack.c.l.b16 %v269
    %v834 = vunpack.c.h.b16 %v269
    %v835 = vunpack.c.l.b16 %v270
    %v836 = vunpack.c.h.b16 %v270
    %v837 = vunpack.c.l.b16 %v271
    %v838 = vunpack.c.h.b16 %v271
    %v839 = vunpack.c.l.b16 %v272
    %v840 = vunpack.c.h.b16 %v272
    %v841 = vunpack.c.l.b16 %v273
    %v842 = vunpack.c.h.b16 %v273
    %v843 = vunpack.c.l.b16 %v274
    %v844 = vunpack.c.h.b16 %v274
    %v845 = vunpack.c.l.b16 %v275
    %v846 = vunpack.c.h.b16 %v275
    %v847 = vunpack.c.l.b16 %v276
    %v848 = vunpack.c.h.b16 %v276
    %v849 = vunpack.c.l.b16 %v277
    %v850 = vunpack.c.h.b16 %v277
    %v851 = vunpack.c.l.b16 %v278
    %v852 = vunpack.c.h.b16 %v278
    %v853 = vunpack.c.l.b16 %v279
    %v854 = vunpack.c.h.b16 %v279
    %v855 = vunpack.c.l.b16 %v280
    %v856 = vunpack.c.h.b16 %v280
    %v857 = vunpack.c.l.b16 %v281
    %v858 = vunpack.c.h.b16 %v281
    %v859 = vunpack.c.l.b16 %v282
    %v860 = vunpack.c.h.b16 %v282
    %v861 = vunpack.c.l.b16 %v283
    %v862 = vunpack.c.h.b16 %v283
    %v863 = vunpack.c.l.b16 %v284
    %v864 = vunpack.c.h.b16 %v284
    %v865 = vunpack.c.l.b16 %v285
    %v866 = vunpack.c.h.b16 %v285
    %v867 = vunpack.c.l.b16 %v286
    %v868 = vunpack.c.h.b16 %v286
    %v869 = vunpack.c.l.b16 %v287
    %v870 = vunpack.c.h.b16 %v287
    %v871 = vunpack.c.l.b16 %v288
    %v872 = vunpack.c.h.b16 %v288
    %v873 = vunpack.c.l.b16 %v289
    %v874 = vunpack.c.h.b16 %v289
    %v875 = vunpack.c.l.b16 %v290
    %v876 = vunpack.c.h.b16 %v290
    %v877 = vunpack.c.l.b16 %v291
    %v878 = vunpack.c.h.b16 %v291
    %v879 = vunpack.c.l.b16 %v292
    %v880 = vunpack.c.h.b16 %v292
    %v881 = vunpack.c.l.b16 %v293
    %v882 = vunpack.c.h.b16 %v293
    %v883 = vunpack.c.l.b16 %v294
    %v884 = vunpack.c.h.b16 %v294
    %v885 = vunpack.c.l.b16 %v295
    %v886 = vunpack.c.h.b16 %v295
    %v887 = vunpack.c.l.b16 %v296
    %v888 = vunpack.c.h.b16 %v296
    %v889 = vunpack.c.l.b16 %v297
    %v890 = vunpack.c.h.b16 %v297
    %v891 = vunpack.c.l.b16 %v298
    %v892 = vunpack.c.h.b16 %v298
    %v893 = vunpack.c.l.b16 %v299
    %v894 = vunpack.c.h.b16 %v299
    %v895 = vunpack.c.l.b16 %v300
    %v896 = vunpack.c.h.b16 %v300
    %v897 = vunpack.c.l.b16 %v301
    %v898 = vunpack.c.h.b16 %v301
    %v899 = vunpack.c.l.b16 %v302
    %v900 = vunpack.c.h.b16 %v302
    %v901 = vunpack.c.l.b16 %v303
    %v902 = vunpack.c.h.b16 %v303
    %v903 = vunpack.c.l.b16 %v304
    %v904 = vunpack.c.h.b16 %v304
    %v905 = vunpack.c.l.b16 %v305
    %v906 = vunpack.c.h.b16 %v305
    %v907 = vunpack.c.l.b16 %v306
    %v908 = vunpack.c.h.b16 %v306
    %v909 = vunpack.c.l.b16 %v307
    %v910 = vunpack.c.h.b16 %v307
    %v911 = vunpack.c.l.b16 %v308
    %v912 = vunpack.c.h.b16 %v308
    %v913 = vunpack.c.l.b16 %v309
    %v914 = vunpack.c.h.b16 %v309
    %v915 = vunpack.c.l.b16 %v310
    %v916 = vunpack.c.h.b16 %v310
    %v917 = vunpack.c.l.b16 %v311
    %v918 = vunpack.c.h.b16 %v311
    %v919 = vunpack.c.l.b16 %v312
    %v920 = vunpack.c.h.b16 %v312
    %v921 = vunpack.c.l.b16 %v313
    %v922 = vunpack.c.h.b16 %v313
    %v923 = vunpack.c.l.b16 %v314
    %v924 = vunpack.c.h.b16 %v314
    %v925 = vpack.c.b16 %v537, %v533
    %v926 = vpack.c.b16 %v538, %v534
    %v927 = vpack.c.b16 %v539, %v535
    %v928 = vpack.c.b16 %v540, %v536
    %v929 = vpack.c.b16 %v545, %v541
    %v930 = vpack.c.b16 %v546, %v542
    %v931 = vpack.c.b16 %v547, %v543
    %v932 = vpack.c.b16 %v548, %v544
    %v933 = vpack.c.b16 %v553, %v549
    %v934 = vpack.c.b16 %v554, %v550
    %v935 = vpack.c.b16 %v555, %v551
    %v936 = vpack.c.b16 %v556, %v552
    %v937 = vpack.c.b16 %v561, %v557
    %v938 = vpack.c.b16 %v562, %v558
    %v939 = vpack.c.b16 %v563, %v559
    %v940 = vpack.c.b16 %v564, %v560
    %v941 = vpack.c.b16 %v569, %v565
    %v942 = vpack.c.b16 %v570, %v566
    %v943 = vpack.c.b16 %v571, %v567
    %v944 = vpack.c.b16 %v572, %v568
    %v945 = vpack.c.b16 %v577, %v573
    %v946 = vpack.c.b16 %v578, %v574
    %v947 = vpack.c.b16 %v579, %v575
    %v948 = vpack.c.b16 %v580, %v576
    %v949 = vpack.c.b16 %v585, %v581
    %v950 = vpack.c.b16 %v586, %v582
    %v951 = vpack.c.b16 %v587, %v583
    %v952 = vpack.c.b16 %v588, %v584
    %v953 = vpack.c.b16 %v593, %v589
    %v954 = vpack.c.b16 %v594, %v590
    %v955 = vpack.c.b16 %v595, %v591
    %v956 = vpack.c.b16 %v596, %v592
    %v957 = vpack.c.b16 %v601, %v597
    %v958 = vpack.c.b16 %v602, %v598
    %v959 = vpack.c.b16 %v603, %v599
    %v960 = vpack.c.b16 %v604, %v600
    %v961 = vpack.c.b16 %v609, %v605
    %v962 = vpack.c.b16 %v610, %v606
    %v963 = vpack.c.b16 %v611, %v607
    %v964 = vpack.c.b16 %v612, %v608
    %v965 = vpack.c.b16 %v617, %v613
    %v966 = vpack.c.b16 %v618, %v614
    %v967 = vpack.c.b16 %v619, %v615
    %v968 = vpack.c.b16 %v620, %v616
    %v969 = vpack.c.b16 %v625, %v621
    %v970 = vpack.c.b16 %v626, %v622
    %v971 = vpack.c.b16 %v627, %v623
    %v972 = vpack.c.b16 %v628, %v624
    %v973 = vpack.c.b16 %v633, %v629
    %v974 = vpack.c.b16 %v634, %v630
    %v975 = vpack.c.b16 %v635, %v631
    %v976 = vpack.c.b16 %v636, %v632
    %v977 = vpack.c.b16 %v641, %v637
    %v978 = vpack.c.b16 %v642, %v638
    %v979 = vpack.c.b16 %v643, %v639
    %v980 = vpack.c.b16 %v644, %v640
    %v981 = vpack.c.b16 %v649, %v645
    %v982 = vpack.c.b16 %v650, %v646
    %v983 = vpack.c.b16 %v651, %v647
    %v984 = vpack.c.b16 %v652, %v648
    %v985 = vpack.c.b16 %v657, %v653
    %v986 = vpack.c.b16 %v658, %v654
    %v987 = vpack.c.b16 %v659, %v655
    %v988 = vpack.c.b16 %v660, %v656
    %v989 = vpack.c.b16 %v665, %v661
    %v990 = vpack.c.b16 %v666, %v662
    %v991 = vpack.c.b16 %v667, %v663
    %v992 = vpack.c.b16 %v668, %v664
    %v993 = vpack.c.b16 %v673, %v669
    %v994 = vpack.c.b16 %v674, %v670
    %v995 = vpack.c.b16 %v675, %v671
    %v996 = vpack.c.b16 %v676, %v672
    %v997 = vpack.c.b16 %v681, %v677
    %v998 = vpack.c.b16 %v682, %v678
    %v999 = vpack.c.b16 %v683, %v679
    %v1000 = vpack.c.b16 %v684, %v680
    %v1001 = vpack.c.b16 %v689, %v685
    %v1002 = vpack.c.b16 %v690, %v686
    %v1003 = vpack.c.b16 %v691, %v687
    %v1004 = vpack.c.b16 %v692, %v688
    %v1005 = vpack.c.b16 %v697, %v693
    %v1006 = vpack.c.b16 %v698, %v694
    %v1007 = vpack.c.b16 %v699, %v695
    %v1008 = vpack.c.b16 %v700, %v696
    %v1009 = vpack.c.b16 %v705, %v701
    %v1010 = vpack.c.b16 %v706, %v702
    %v1011 = vpack.c.b16 %v707, %v703
    %v1012 = vpack.c.b16 %v708, %v704
    %v1013 = vpack.c.b16 %v713, %v709
    %v1014 = vpack.c.b16 %v714, %v710
    %v1015 = vpack.c.b16 %v715, %v711
    %v1016 = vpack.c.b16 %v716, %v712
    %v1017 = vpack.c.b16 %v721, %v717
    %v1018 = vpack.c.b16 %v722, %v718
    %v1019 = vpack.c.b16 %v723, %v719
    %v1020 = vpack.c.b16 %v724, %v720
    %v1021 = vpack.c.b16 %v729, %v725
    %v1022 = vpack.c.b16 %v730, %v726
    %v1023 = vpack.c.b16 %v731, %v727
    %v1024 = vpack.c.b16 %v732, %v728
    %v1025 = vpack.c.b16 %v737, %v733
    %v1026 = vpack.c.b16 %v738, %v734
    %v1027 = vpack.c.b16 %v739, %v735
    %v1028 = vpack.c.b16 %v740, %v736
    %v1029 = vpack.c.b16 %v745, %v741
    %v1030 = vpack.c.b16 %v746, %v742
    %v1031 = vpack.c.b16 %v747, %v743
    %v1032 = vpack.c.b16 %v748, %v744
    %v1033 = vpack.c.b16 %v753, %v749
    %v1034 = vpack.c.b16 %v754, %v750
    %v1035 = vpack.c.b16 %v755, %v751
    %v1036 = vpack.c.b16 %v756, %v752
    %v1037 = vpack.c.b16 %v761, %v757
    %v1038 = vpack.c.b16 %v762, %v758
    %v1039 = vpack.c.b16 %v763, %v759
    %v1040 = vpack.c.b16 %v764, %v760
    %v1041 = vpack.c.b16 %v769, %v765
    %v1042 = vpack.c.b16 %v770, %v766
    %v1043 = vpack.c.b16 %v771, %v767
    %v1044 = vpack.c.b16 %v772, %v768
    %v1045 = vpack.c.b16 %v777, %v773
    %v1046 = vpack.c.b16 %v778, %v774
    %v1047 = vpack.c.b16 %v779, %v775
    %v1048 = vpack.c.b16 %v780, %v776
    %v1049 = vpack.c.b16 %v785, %v781
    %v1050 = vpack.c.b16 %v786, %v782
    %v1051 = vpack.c.b16 %v787, %v783
    %v1052 = vpack.c.b16 %v788, %v784
    %v1053 = vpack.c.b16 %v793, %v789
    %v1054 = vpack.c.b16 %v794, %v790
    %v1055 = vpack.c.b16 %v795, %v791
    %v1056 = vpack.c.b16 %v796, %v792
    %v1057 = vpack.c.b16 %v801, %v797
    %v1058 = vpack.c.b16 %v802, %v798
    %v1059 = vpack.c.b16 %v803, %v799
    %v1060 = vpack.c.b16 %v804, %v800
    %v1061 = vpack.c.b16 %v809, %v805
    %v1062 = vpack.c.b16 %v810, %v806
    %v1063 = vpack.c.b16 %v811, %v807
    %v1064 = vpack.c.b16 %v812, %v808
    %v1065 = vpack.c.b16 %v817, %v813
    %v1066 = vpack.c.b16 %v818, %v814
    %v1067 = vpack.c.b16 %v819, %v815
    %v1068 = vpack.c.b16 %v820, %v816
    %v1069 = vpack.c.b16 %v825, %v821
    %v1070 = vpack.c.b16 %v826, %v822
    %v1071 = vpack.c.b16 %v827, %v823
    %v1072 = vpack.c.b16 %v828, %v824
    %v1073 = vpack.c.b16 %v833, %v829
    %v1074 = vpack.c.b16 %v834, %v830
    %v1075 = vpack.c.b16 %v835, %v831
    %v1076 = vpack.c.b16 %v836, %v832
    %v1077 = vpack.c.b16 %v841, %v837
    %v1078 = vpack.c.b16 %v842, %v838
    %v1079 = vpack.c.b16 %v843, %v839
    %v1080 = vpack.c.b16 %v844, %v840
    %v1081 = vpack.c.b16 %v849, %v845
    %v1082 = vpack.c.b16 %v850, %v846
    %v1083 = vpack.c.b16 %v851, %v847
    %v1084 = vpack.c.b16 %v852, %v848
    %v1085 = vpack.c.b16 %v857, %v853
    %v1086 = vpack.c.b16 %v858, %v854
    %v1087 = vpack.c.b16 %v859, %v855
    %v1088 = vpack.c.b16 %v860, %v856
    %v1089 = vpack.c.b16 %v865, %v861
    %v1090 = vpack.c.b16 %v866, %v862
    %v1091 = vpack.c.b16 %v867, %v863
    %v1092 = vpack.c.b16 %v868, %v864
    %v1093 = vpack.c.b16 %v873, %v869
    %v1094 = vpack.c.b16 %v874, %v870
    %v1095 = vpack.c.b16 %v875, %v871
    %v1096 = vpack.c.b16 %v876, %v872
    %v1097 = vpack.c.b16 %v881, %v877
    %v1098 = vpack.c.b16 %v882, %v878
    %v1099 = vpack.c.b16 %v883, %v879
    %v1100 = vpack.c.b16 %v884, %v880
    %v1101 = vpack.c.b16 %v889, %v885
    %v1102 = vpack.c.b16 %v890, %v886
    %v1103 = vpack.c.b16 %v891, %v887
    %v1104 = vpack.c.b16 %v892, %v888
    %v1105 = vpack.c.b16 %v897, %v893
    %v1106 = vpack.c.b16 %v898, %v894
    %v1107 = vpack.c.b16 %v899, %v895
    %v1108 = vpack.c.b16 %v900, %v896
    %v1109 = vpack.c.b16 %v905, %v901
    %v1110 = vpack.c.b16 %v906, %v902
    %v1111 = vpack.c.b16 %v907, %v903
    %v1112 = vpack.c.b16 %v908, %v904
    %v1113 = vpack.c.b16 %v913, %v909
    %v1114 = vpack.c.b16 %v914, %v910
    %v1115 = vpack.c.b16 %v915, %v911
    %v1116 = vpack.c.b16 %v916, %v912
    %v1117 = vpack.c.b16 %v921, %v917
    %v1118 = vpack.c.b16 %v922, %v918
    %v1119 = vpack.c.b16 %v923, %v919
    %v1120 = vpack.c.b16 %v924, %v920
    %vm1317 = vcmask 130048
    %v1319 = vsel %vm1317, %v118, 0
    %1321 = vmatprep.subr.bf16.mxu0 %v926
    %1322 = vmatpush1.bf16.msra.mxu0 %v925
    %1323 = vmatprep.subr.bf16.mxu0 %v930
    %1324 = vmatpush1.bf16.msra.mxu0 %v929
    %1325 = vmatprep.subr.bf16.mxu0 %v934
    %1326 = vmatpush1.bf16.msra.mxu0 %v933
    %1327 = vmatprep.subr.bf16.mxu0 %v938
    %1328 = vmatpush1.bf16.msra.mxu0 %v937
    %1329 = vmatprep.subr.bf16.mxu0 %v942
    %1330 = vmatpush1.bf16.msra.mxu0 %v941
    %1331 = vmatprep.subr.bf16.mxu0 %v946
    %1332 = vmatpush1.bf16.msra.mxu0 %v945
    %1333 = vmatprep.subr.bf16.mxu0 %v950
    %1334 = vmatpush1.bf16.msra.mxu0 %v949
    %1335 = vmatprep.subr.bf16.mxu0 %v954
    %1336 = vmatpush1.bf16.msra.mxu0 %v953
    %1337 = vmatprep.subr.bf16.mxu0 %v958
    %1338 = vmatpush1.bf16.msra.mxu0 %v957
    %1339 = vmatprep.subr.bf16.mxu0 %v962
    %1340 = vmatpush1.bf16.msra.mxu0 %v961
    %1341 = vmatprep.subr.bf16.mxu0 %v966
    %1342 = vmatpush1.bf16.msra.mxu0 %v965
    %1343 = vmatprep.subr.bf16.mxu0 %v970
    %1344 = vmatpush1.bf16.msra.mxu0 %v969
    %1345 = vmatprep.subr.bf16.mxu0 %v974
    %1346 = vmatpush1.bf16.msra.mxu0 %v973
    %1347 = vmatprep.subr.bf16.mxu0 %v978
    %1348 = vmatpush1.bf16.msra.mxu0 %v977
    %1349 = vmatprep.subr.bf16.mxu0 %v982
    %1350 = vmatpush1.bf16.msra.mxu0 %v981
    %1351 = vmatprep.subr.bf16.mxu0 %v986
    %1352 = vmatpush1.bf16.msra.mxu0 %v985
    %1353 = vmatprep.mubr.bf16.mxu0 %v113
    %1354 = vmatmul.mubr.bf16.gmra.mrb[0].mxu0 %v112
    %v1355 = vpop.f32.mrb[0].mxu0
    %v1356 = vadd.f32 %v320, %v1355
    %v1357 = vpop.f32.mrb[0].mxu0
    %v1358 = vadd.f32 %v324, %v1357
    %v1359 = vpop.f32.mrb[0].mxu0
    %v1360 = vpop.f32.mrb[0].mxu0
    %1361 = vdwg.mxu0
    %1362 = vmatprep.subr.bf16.mxu0 %v990
    %1363 = vmatpush1.bf16.msra.mxu0 %v989
    %1364 = vmatprep.subr.bf16.mxu0 %v994
    %1365 = vmatpush1.bf16.msra.mxu0 %v993
    %1366 = vmatprep.subr.bf16.mxu0 %v998
    %1367 = vmatpush1.bf16.msra.mxu0 %v997
    %1368 = vmatprep.subr.bf16.mxu0 %v1002
    %1369 = vmatpush1.bf16.msra.mxu0 %v1001
    %1370 = vmatprep.subr.bf16.mxu0 %v1006
    %1371 = vmatpush1.bf16.msra.mxu0 %v1005
    %1372 = vmatprep.subr.bf16.mxu0 %v1010
    %1373 = vmatpush1.bf16.msra.mxu0 %v1009
    %1374 = vmatprep.subr.bf16.mxu0 %v1014
    %1375 = vmatpush1.bf16.msra.mxu0 %v1013
    %1376 = vmatprep.subr.bf16.mxu0 %v1018
    %1377 = vmatpush1.bf16.msra.mxu0 %v1017
    %1378 = vmatprep.subr.bf16.mxu0 %v1022
    %1379 = vmatpush1.bf16.msra.mxu0 %v1021
    %1380 = vmatprep.subr.bf16.mxu0 %v1026
    %1381 = vmatpush1.bf16.msra.mxu0 %v1025
    %1382 = vmatprep.subr.bf16.mxu0 %v1030
    %1383 = vmatpush1.bf16.msra.mxu0 %v1029
    %1384 = vmatprep.subr.bf16.mxu0 %v1034
    %1385 = vmatpush1.bf16.msra.mxu0 %v1033
    %1386 = vmatprep.subr.bf16.mxu0 %v1038
    %1387 = vmatpush1.bf16.msra.mxu0 %v1037
    %1388 = vmatprep.subr.bf16.mxu0 %v1042
    %1389 = vmatpush1.bf16.msra.mxu0 %v1041
    %1390 = vmatprep.subr.bf16.mxu0 %v1046
    %1391 = vmatpush1.bf16.msra.mxu0 %v1045
    %1392 = vmatprep.subr.bf16.mxu0 %v1050
    %1393 = vmatpush1.bf16.msra.mxu0 %v1049
    %1394 = vmatprep.mubr.bf16.mxu0 %v115
    %1395 = vmatmul.mubr.bf16.gmra.mrb[0].mxu0 %v114
    %v1396 = vpop.f32.mrb[0].mxu0
    %v1397 = vadd.f32 %v1356, %v1396
    %v1398 = vpop.f32.mrb[0].mxu0
    %v1399 = vadd.f32 %v1358, %v1398
    %v1400 = vpop.f32.mrb[0].mxu0
    %v1401 = vpop.f32.mrb[0].mxu0
    %1402 = vdwg.mxu0
    %1403 = vmatprep.subr.bf16.mxu0 %v1054
    %1404 = vmatpush1.bf16.msra.mxu0 %v1053
    %1405 = vmatprep.subr.bf16.mxu0 %v1058
    %1406 = vmatpush1.bf16.msra.mxu0 %v1057
    %1407 = vmatprep.subr.bf16.mxu0 %v1062
    %1408 = vmatpush1.bf16.msra.mxu0 %v1061
    %1409 = vmatprep.subr.bf16.mxu0 %v1066
    %1410 = vmatpush1.bf16.msra.mxu0 %v1065
    %1411 = vmatprep.subr.bf16.mxu0 %v1070
    %1412 = vmatpush1.bf16.msra.mxu0 %v1069
    %1413 = vmatprep.subr.bf16.mxu0 %v1074
    %1414 = vmatpush1.bf16.msra.mxu0 %v1073
    %1415 = vmatprep.subr.bf16.mxu0 %v1078
    %1416 = vmatpush1.bf16.msra.mxu0 %v1077
    %1417 = vmatprep.subr.bf16.mxu0 %v1082
    %1418 = vmatpush1.bf16.msra.mxu0 %v1081
    %1419 = vmatprep.subr.bf16.mxu0 %v1086
    %1420 = vmatpush1.bf16.msra.mxu0 %v1085
    %1421 = vmatprep.subr.bf16.mxu0 %v1090
    %1422 = vmatpush1.bf16.msra.mxu0 %v1089
    %1423 = vmatprep.subr.bf16.mxu0 %v1094
    %1424 = vmatpush1.bf16.msra.mxu0 %v1093
    %1425 = vmatprep.subr.bf16.mxu0 %v1098
    %1426 = vmatpush1.bf16.msra.mxu0 %v1097
    %1427 = vmatprep.subr.bf16.mxu0 %v1102
    %1428 = vmatpush1.bf16.msra.mxu0 %v1101
    %1429 = vmatprep.subr.bf16.mxu0 %v1106
    %1430 = vmatpush1.bf16.msra.mxu0 %v1105
    %1431 = vmatprep.subr.bf16.mxu0 %v1110
    %1432 = vmatpush1.bf16.msra.mxu0 %v1109
    %1433 = vmatprep.subr.bf16.mxu0 %v1114
    %1434 = vmatpush1.bf16.msra.mxu0 %v1113
    %1435 = vmatprep.mubr.bf16.mxu0 %v117
    %1436 = vmatmul.mubr.bf16.gmra.mrb[0].mxu0 %v116
    %v1437 = vpop.f32.mrb[0].mxu0
    %v1438 = vadd.f32 %v1397, %v1437
    %v1439 = vpop.f32.mrb[0].mxu0
    %v1440 = vadd.f32 %v1399, %v1439
    %v1441 = vpop.f32.mrb[0].mxu0
    %v1442 = vpop.f32.mrb[0].mxu0
    %1443 = vdwg.mxu0
    %1444 = vmatprep.subr.bf16.mxu0 %v1118
    %1445 = vmatpush1.bf16.msra.mxu0 %v1117
    %1446 = vmatprep.subr.bf16.mxu0 0
    %1447 = vmatpush1.bf16.msra.mxu0 0
    %1448 = vmatprep.subr.bf16.mxu0 0
    %1449 = vmatpush1.bf16.msra.mxu0 0
    %1450 = vmatprep.subr.bf16.mxu0 0
    %1451 = vmatpush1.bf16.msra.mxu0 0
    %1452 = vmatprep.subr.bf16.mxu0 0
    %1453 = vmatpush1.bf16.msra.mxu0 0
    %1454 = vmatprep.subr.bf16.mxu0 0
    %1455 = vmatpush1.bf16.msra.mxu0 0
    %1456 = vmatprep.subr.bf16.mxu0 0
    %1457 = vmatpush1.bf16.msra.mxu0 0
    %1458 = vmatprep.subr.bf16.mxu0 0
    %1459 = vmatpush1.bf16.msra.mxu0 0
    %1460 = vmatprep.subr.bf16.mxu0 0
    %1461 = vmatpush1.bf16.msra.mxu0 0
    %1462 = vmatprep.subr.bf16.mxu0 0
    %1463 = vmatpush1.bf16.msra.mxu0 0
    %1464 = vmatprep.subr.bf16.mxu0 0
    %1465 = vmatpush1.bf16.msra.mxu0 0
    %1466 = vmatprep.subr.bf16.mxu0 0
    %1467 = vmatpush1.bf16.msra.mxu0 0
    %1468 = vmatprep.subr.bf16.mxu0 0
    %1469 = vmatpush1.bf16.msra.mxu0 0
    %1470 = vmatprep.subr.bf16.mxu0 0
    %1471 = vmatpush1.bf16.msra.mxu0 0
    %1472 = vmatprep.subr.bf16.mxu0 0
    %1473 = vmatpush1.bf16.msra.mxu0 0
    %1474 = vmatprep.subr.bf16.mxu0 0
    %1475 = vmatpush1.bf16.msra.mxu0 0
    %1476 = vmatprep.mubr.bf16.mxu0 0
    %1477 = vmatmul.mubr.bf16.gmra.mrb[0].mxu0 %v1319
    %v1478 = vpop.f32.mrb[0].mxu0
    %v1479 = vadd.f32 %v1438, %v1478
    %v1480 = vpop.f32.mrb[0].mxu0
    %v1481 = vadd.f32 %v1440, %v1480
    %v1482 = vpop.f32.mrb[0].mxu0
    %v1483 = vpop.f32.mrb[0].mxu0
    %1484 = vdwg.mxu0
    %1485 = vmatprep.subr.bf16.mxu0 %v928
    %1486 = vmatpush1.bf16.msra.mxu0 %v927
    %1487 = vmatprep.subr.bf16.mxu0 %v932
    %1488 = vmatpush1.bf16.msra.mxu0 %v931
    %1489 = vmatprep.subr.bf16.mxu0 %v936
    %1490 = vmatpush1.bf16.msra.mxu0 %v935
    %1491 = vmatprep.subr.bf16.mxu0 %v940
    %1492 = vmatpush1.bf16.msra.mxu0 %v939
    %1493 = vmatprep.subr.bf16.mxu0 %v944
    %1494 = vmatpush1.bf16.msra.mxu0 %v943
    %1495 = vmatprep.subr.bf16.mxu0 %v948
    %1496 = vmatpush1.bf16.msra.mxu0 %v947
    %1497 = vmatprep.subr.bf16.mxu0 %v952
    %1498 = vmatpush1.bf16.msra.mxu0 %v951
    %1499 = vmatprep.subr.bf16.mxu0 %v956
    %1500 = vmatpush1.bf16.msra.mxu0 %v955
    %1501 = vmatprep.subr.bf16.mxu0 %v960
    %1502 = vmatpush1.bf16.msra.mxu0 %v959
    %1503 = vmatprep.subr.bf16.mxu0 %v964
    %1504 = vmatpush1.bf16.msra.mxu0 %v963
    %1505 = vmatprep.subr.bf16.mxu0 %v968
    %1506 = vmatpush1.bf16.msra.mxu0 %v967
    %1507 = vmatprep.subr.bf16.mxu0 %v972
    %1508 = vmatpush1.bf16.msra.mxu0 %v971
    %1509 = vmatprep.subr.bf16.mxu0 %v976
    %1510 = vmatpush1.bf16.msra.mxu0 %v975
    %1511 = vmatprep.subr.bf16.mxu0 %v980
    %1512 = vmatpush1.bf16.msra.mxu0 %v979
    %1513 = vmatprep.subr.bf16.mxu0 %v984
    %1514 = vmatpush1.bf16.msra.mxu0 %v983
    %1515 = vmatprep.subr.bf16.mxu0 %v988
    %1516 = vmatpush1.bf16.msra.mxu0 %v987
    %1517 = vmatprep.mubr.bf16.mxu0 %v113
    %1518 = vmatmul.mubr.bf16.gmra.mrb[0].mxu0 %v112
    %v1519 = vpop.f32.mrb[0].mxu0
    %v1520 = vadd.f32 %v328, %v1519
    %v1521 = vpop.f32.mrb[0].mxu0
    %v1522 = vadd.f32 %v332, %v1521
    %v1523 = vpop.f32.mrb[0].mxu0
    %v1524 = vpop.f32.mrb[0].mxu0
    %1525 = vdwg.mxu0
    %1526 = vmatprep.subr.bf16.mxu0 %v992
    %1527 = vmatpush1.bf16.msra.mxu0 %v991
    %1528 = vmatprep.subr.bf16.mxu0 %v996
    %1529 = vmatpush1.bf16.msra.mxu0 %v995
    %1530 = vmatprep.subr.bf16.mxu0 %v1000
    %1531 = vmatpush1.bf16.msra.mxu0 %v999
    %1532 = vmatprep.subr.bf16.mxu0 %v1004
    %1533 = vmatpush1.bf16.msra.mxu0 %v1003
    %1534 = vmatprep.subr.bf16.mxu0 %v1008
    %1535 = vmatpush1.bf16.msra.mxu0 %v1007
    %1536 = vmatprep.subr.bf16.mxu0 %v1012
    %1537 = vmatpush1.bf16.msra.mxu0 %v1011
    %1538 = vmatprep.subr.bf16.mxu0 %v1016
    %1539 = vmatpush1.bf16.msra.mxu0 %v1015
    %1540 = vmatprep.subr.bf16.mxu0 %v1020
    %1541 = vmatpush1.bf16.msra.mxu0 %v1019
    %1542 = vmatprep.subr.bf16.mxu0 %v1024
    %1543 = vmatpush1.bf16.msra.mxu0 %v1023
    %1544 = vmatprep.subr.bf16.mxu0 %v1028
    %1545 = vmatpush1.bf16.msra.mxu0 %v1027
    %1546 = vmatprep.subr.bf16.mxu0 %v1032
    %1547 = vmatpush1.bf16.msra.mxu0 %v1031
    %1548 = vmatprep.subr.bf16.mxu0 %v1036
    %1549 = vmatpush1.bf16.msra.mxu0 %v1035
    %1550 = vmatprep.subr.bf16.mxu0 %v1040
    %1551 = vmatpush1.bf16.msra.mxu0 %v1039
    %1552 = vmatprep.subr.bf16.mxu0 %v1044
    %1553 = vmatpush1.bf16.msra.mxu0 %v1043
    %1554 = vmatprep.subr.bf16.mxu0 %v1048
    %1555 = vmatpush1.bf16.msra.mxu0 %v1047
    %1556 = vmatprep.subr.bf16.mxu0 %v1052
    %1557 = vmatpush1.bf16.msra.mxu0 %v1051
    %1558 = vmatprep.mubr.bf16.mxu0 %v115
    %1559 = vmatmul.mubr.bf16.gmra.mrb[0].mxu0 %v114
    %v1560 = vpop.f32.mrb[0].mxu0
    %v1561 = vadd.f32 %v1520, %v1560
    %v1562 = vpop.f32.mrb[0].mxu0
    %v1563 = vadd.f32 %v1522, %v1562
    %v1564 = vpop.f32.mrb[0].mxu0
    %v1565 = vpop.f32.mrb[0].mxu0
    %1566 = vdwg.mxu0
    %1567 = vmatprep.subr.bf16.mxu0 %v1056
    %1568 = vmatpush1.bf16.msra.mxu0 %v1055
    %1569 = vmatprep.subr.bf16.mxu0 %v1060
    %1570 = vmatpush1.bf16.msra.mxu0 %v1059
    %1571 = vmatprep.subr.bf16.mxu0 %v1064
    %1572 = vmatpush1.bf16.msra.mxu0 %v1063
    %1573 = vmatprep.subr.bf16.mxu0 %v1068
    %1574 = vmatpush1.bf16.msra.mxu0 %v1067
    %1575 = vmatprep.subr.bf16.mxu0 %v1072
    %1576 = vmatpush1.bf16.msra.mxu0 %v1071
    %1577 = vmatprep.subr.bf16.mxu0 %v1076
    %1578 = vmatpush1.bf16.msra.mxu0 %v1075
    %1579 = vmatprep.subr.bf16.mxu0 %v1080
    %1580 = vmatpush1.bf16.msra.mxu0 %v1079
    %1581 = vmatprep.subr.bf16.mxu0 %v1084
    %1582 = vmatpush1.bf16.msra.mxu0 %v1083
    %1583 = vmatprep.subr.bf16.mxu0 %v1088
    %1584 = vmatpush1.bf16.msra.mxu0 %v1087
    %1585 = vmatprep.subr.bf16.mxu0 %v1092
    %1586 = vmatpush1.bf16.msra.mxu0 %v1091
    %1587 = vmatprep.subr.bf16.mxu0 %v1096
    %1588 = vmatpush1.bf16.msra.mxu0 %v1095
    %1589 = vmatprep.subr.bf16.mxu0 %v1100
    %1590 = vmatpush1.bf16.msra.mxu0 %v1099
    %1591 = vmatprep.subr.bf16.mxu0 %v1104
    %1592 = vmatpush1.bf16.msra.mxu0 %v1103
    %1593 = vmatprep.subr.bf16.mxu0 %v1108
    %1594 = vmatpush1.bf16.msra.mxu0 %v1107
    %1595 = vmatprep.subr.bf16.mxu0 %v1112
    %1596 = vmatpush1.bf16.msra.mxu0 %v1111
    %1597 = vmatprep.subr.bf16.mxu0 %v1116
    %1598 = vmatpush1.bf16.msra.mxu0 %v1115
    %1599 = vmatprep.mubr.bf16.mxu0 %v117
    %1600 = vmatmul.mubr.bf16.gmra.mrb[0].mxu0 %v116
    %v1601 = vpop.f32.mrb[0].mxu0
    %v1602 = vadd.f32 %v1561, %v1601
    %v1603 = vpop.f32.mrb[0].mxu0
    %v1604 = vadd.f32 %v1563, %v1603
    %v1605 = vpop.f32.mrb[0].mxu0
    %v1606 = vpop.f32.mrb[0].mxu0
    %1607 = vdwg.mxu0
    %1608 = vmatprep.subr.bf16.mxu0 %v1120
    %1609 = vmatpush1.bf16.msra.mxu0 %v1119
    %1610 = vmatprep.subr.bf16.mxu0 0
    %1611 = vmatpush1.bf16.msra.mxu0 0
    %1612 = vmatprep.subr.bf16.mxu0 0
    %1613 = vmatpush1.bf16.msra.mxu0 0
    %1614 = vmatprep.subr.bf16.mxu0 0
    %1615 = vmatpush1.bf16.msra.mxu0 0
    %1616 = vmatprep.subr.bf16.mxu0 0
    %1617 = vmatpush1.bf16.msra.mxu0 0
    %1618 = vmatprep.subr.bf16.mxu0 0
    %1619 = vmatpush1.bf16.msra.mxu0 0
    %1620 = vmatprep.subr.bf16.mxu0 0
    %1621 = vmatpush1.bf16.msra.mxu0 0
    %1622 = vmatprep.subr.bf16.mxu0 0
    %1623 = vmatpush1.bf16.msra.mxu0 0
    %1624 = vmatprep.subr.bf16.mxu0 0
    %1625 = vmatpush1.bf16.msra.mxu0 0
    %1626 = vmatprep.subr.bf16.mxu0 0
    %1627 = vmatpush1.bf16.msra.mxu0 0
    %1628 = vmatprep.subr.bf16.mxu0 0
    %1629 = vmatpush1.bf16.msra.mxu0 0
    %1630 = vmatprep.subr.bf16.mxu0 0
    %1631 = vmatpush1.bf16.msra.mxu0 0
    %1632 = vmatprep.subr.bf16.mxu0 0
    %1633 = vmatpush1.bf16.msra.mxu0 0
    %1634 = vmatprep.subr.bf16.mxu0 0
    %1635 = vmatpush1.bf16.msra.mxu0 0
    %1636 = vmatprep.subr.bf16.mxu0 0
    %1637 = vmatpush1.bf16.msra.mxu0 0
    %1638 = vmatprep.subr.bf16.mxu0 0
    %1639 = vmatpush1.bf16.msra.mxu0 0
    %1640 = vmatprep.mubr.bf16.mxu0 0
    %1641 = vmatmul.mubr.bf16.gmra.mrb[0].mxu0 %v1319
    %v1642 = vpop.f32.mrb[0].mxu0
    %v1643 = vadd.f32 %v1602, %v1642
    %v1644 = vpop.f32.mrb[0].mxu0
    %v1645 = vadd.f32 %v1604, %v1644
    %v1646 = vpop.f32.mrb[0].mxu0
    %v1647 = vpop.f32.mrb[0].mxu0
    %1648 = vdwg.mxu0
    %v1649 = vmax.f32 %v1479, 0.0
    %v1650 = vmax.f32 %v1481, 0.0
    %v1651 = vmax.f32 %v1643, 0.0
    %v1652 = vmax.f32 %v1645, 0.0
    %v1653 = vpack.c.bf16 %v1649, %v1649
    %v1654 = vpack.c.bf16 %v1650, %v1650
    %v1655 = vpack.c.bf16 %v1651, %v1651
    %v1656 = vpack.c.bf16 %v1652, %v1652
    %v1657 = vld [vmem:[#allocation4] sm:$0xff]
    %v1658 = vld [vmem:[#allocation4 + $0x8] sm:$0xff]
    %v1659 = vld [vmem:[#allocation4 + $0x10] sm:$0xff]
    %v1660 = vld [vmem:[#allocation4 + $0x18] sm:$0xff]
    %v1661 = vld [vmem:[#allocation4 + $0x20] sm:$0xff]
    %v1662 = vld [vmem:[#allocation4 + $0x28] sm:$0xff]
    %v1663 = vld [vmem:[#allocation4 + $0x30] sm:$0xff]
    %v1664 = vld [vmem:[#allocation4 + $0x38] sm:$0xff]
    %v1665 = vld [vmem:[#allocation4 + $0x40] sm:$0xff]
    %v1666 = vld [vmem:[#allocation4 + $0x48] sm:$0xff]
    %v1667 = vld [vmem:[#allocation4 + $0x50] sm:$0xff]
    %v1668 = vld [vmem:[#allocation4 + $0x58] sm:$0xff]
    %v1669 = vld [vmem:[#allocation4 + $0x60] sm:$0xff]
    %v1670 = vld [vmem:[#allocation4 + $0x68] sm:$0xff]
    %v1671 = vld [vmem:[#allocation4 + $0x70] sm:$0xff]
    %v1672 = vld [vmem:[#allocation4 + $0x78] sm:$0xff]
    %v1673 = vld [vmem:[#allocation4 + $0x80] sm:$0xff]
    %v1674 = vld [vmem:[#allocation4 + $0x88] sm:$0xff]
    %v1675 = vld [vmem:[#allocation4 + $0x90] sm:$0xff]
    %v1676 = vld [vmem:[#allocation4 + $0x98] sm:$0xff]
    %v1677 = vld [vmem:[#allocation4 + $0xa0] sm:$0xff]
    %v1678 = vld [vmem:[#allocation4 + $0xa8] sm:$0xff]
    %v1679 = vld [vmem:[#allocation4 + $0xb0] sm:$0xff]
    %v1680 = vld [vmem:[#allocation4 + $0xb8] sm:$0xff]
    %v1681 = vld [vmem:[#allocation4 + $0xc0] sm:$0xff]
    %v1682 = vld [vmem:[#allocation4 + $0xc8] sm:$0xff]
    %v1683 = vld [vmem:[#allocation4 + $0xd0] sm:$0xff]
    %v1684 = vld [vmem:[#allocation4 + $0xd8] sm:$0xff]
    %v1685 = vld [vmem:[#allocation4 + $0xe0] sm:$0xff]
    %v1686 = vld [vmem:[#allocation4 + $0xe8] sm:$0xff]
    %v1687 = vld [vmem:[#allocation4 + $0xf0] sm:$0xff]
    %v1688 = vld [vmem:[#allocation4 + $0xf8] sm:$0xff]
    %v1689 = vld [vmem:[#allocation4 + $0x100] sm:$0xff]
    %v1690 = vld [vmem:[#allocation4 + $0x108] sm:$0xff]
    %v1691 = vld [vmem:[#allocation4 + $0x110] sm:$0xff]
    %v1692 = vld [vmem:[#allocation4 + $0x118] sm:$0xff]
    %v1693 = vld [vmem:[#allocation4 + $0x120] sm:$0xff]
    %v1694 = vld [vmem:[#allocation4 + $0x128] sm:$0xff]
    %v1695 = vld [vmem:[#allocation4 + $0x130] sm:$0xff]
    %v1696 = vld [vmem:[#allocation4 + $0x138] sm:$0xff]
    %v1697 = vld [vmem:[#allocation4 + $0x140] sm:$0xff]
    %v1698 = vld [vmem:[#allocation4 + $0x148] sm:$0xff]
    %v1699 = vld [vmem:[#allocation4 + $0x150] sm:$0xff]
    %v1700 = vld [vmem:[#allocation4 + $0x158] sm:$0xff]
    %v1701 = vld [vmem:[#allocation4 + $0x160] sm:$0xff]
    %v1702 = vld [vmem:[#allocation4 + $0x168] sm:$0xff]
    %v1703 = vld [vmem:[#allocation4 + $0x170] sm:$0xff]
    %v1704 = vld [vmem:[#allocation4 + $0x178] sm:$0xff]
    %v1705 = vld [vmem:[#allocation4 + $0x180] sm:$0xff]
    %v1706 = vld [vmem:[#allocation4 + $0x188] sm:$0xff]
    %v1707 = vld [vmem:[#allocation4 + $0x190] sm:$0xff]
    %v1708 = vld [vmem:[#allocation4 + $0x198] sm:$0xff]
    %v1709 = vld [vmem:[#allocation4 + $0x1a0] sm:$0xff]
    %v1710 = vld [vmem:[#allocation4 + $0x1a8] sm:$0xff]
    %v1711 = vld [vmem:[#allocation4 + $0x1b0] sm:$0xff]
    %v1712 = vld [vmem:[#allocation4 + $0x1b8] sm:$0xff]
    %v1713 = vld [vmem:[#allocation4 + $0x1c0] sm:$0xff]
    %v1714 = vld [vmem:[#allocation4 + $0x1c8] sm:$0xff]
    %v1715 = vld [vmem:[#allocation4 + $0x1d0] sm:$0xff]
    %v1716 = vld [vmem:[#allocation4 + $0x1d8] sm:$0xff]
    %v1717 = vld [vmem:[#allocation4 + $0x1e0] sm:$0xff]
    %v1718 = vld [vmem:[#allocation4 + $0x1e8] sm:$0xff]
    %v1719 = vld [vmem:[#allocation4 + $0x1f0] sm:$0xff]
    %v1720 = vld [vmem:[#allocation4 + $0x1f8] sm:$0xff]
    %v1721 = vld [vmem:[#allocation4 + $0x200] sm:$0xff]
    %v1722 = vld [vmem:[#allocation4 + $0x208] sm:$0xff]
    %v1723 = vld [vmem:[#allocation4 + $0x210] sm:$0xff]
    %v1724 = vld [vmem:[#allocation4 + $0x218] sm:$0xff]
    %v1725 = vld [vmem:[#allocation4 + $0x220] sm:$0xff]
    %v1726 = vld [vmem:[#allocation4 + $0x228] sm:$0xff]
    %v1727 = vld [vmem:[#allocation4 + $0x230] sm:$0xff]
    %v1728 = vld [vmem:[#allocation4 + $0x238] sm:$0xff]
    %v1729 = vld [vmem:[#allocation4 + $0x240] sm:$0xff]
    %v1730 = vld [vmem:[#allocation4 + $0x248] sm:$0xff]
    %v1731 = vld [vmem:[#allocation4 + $0x250] sm:$0xff]
    %v1732 = vld [vmem:[#allocation4 + $0x258] sm:$0xff]
    %v1733 = vld [vmem:[#allocation4 + $0x260] sm:$0xff]
    %v1734 = vld [vmem:[#allocation4 + $0x268] sm:$0xff]
    %v1735 = vld [vmem:[#allocation4 + $0x270] sm:$0xff]
    %v1736 = vld [vmem:[#allocation4 + $0x278] sm:$0xff]
    %v1737 = vld [vmem:[#allocation4 + $0x280] sm:$0xff]
    %v1738 = vld [vmem:[#allocation4 + $0x288] sm:$0xff]
    %v1739 = vld [vmem:[#allocation4 + $0x290] sm:$0xff]
    %v1740 = vld [vmem:[#allocation4 + $0x298] sm:$0xff]
    %v1741 = vld [vmem:[#allocation4 + $0x2a0] sm:$0xff]
    %v1742 = vld [vmem:[#allocation4 + $0x2a8] sm:$0xff]
    %v1743 = vld [vmem:[#allocation4 + $0x2b0] sm:$0xff]
    %v1744 = vld [vmem:[#allocation4 + $0x2b8] sm:$0xff]
    %v1745 = vld [vmem:[#allocation4 + $0x2c0] sm:$0xff]
    %v1746 = vld [vmem:[#allocation4 + $0x2c8] sm:$0xff]
    %v1747 = vld [vmem:[#allocation4 + $0x2d0] sm:$0xff]
    %v1748 = vld [vmem:[#allocation4 + $0x2d8] sm:$0xff]
    %v1749 = vld [vmem:[#allocation4 + $0x2e0] sm:$0xff]
    %v1750 = vld [vmem:[#allocation4 + $0x2e8] sm:$0xff]
    %v1751 = vld [vmem:[#allocation4 + $0x2f0] sm:$0xff]
    %v1752 = vld [vmem:[#allocation4 + $0x2f8] sm:$0xff]
    %v1753 = vld [vmem:[#allocation4 + $0x300] sm:$0xff]
    %v1754 = vld [vmem:[#allocation4 + $0x308] sm:$0xff]
    %v1755 = vld [vmem:[#allocation4 + $0x310] sm:$0xff]
    %v1756 = vld [vmem:[#allocation4 + $0x318] sm:$0xff]
    %v1757 = vld [vmem:[#allocation4 + $0x320] sm:$0xff]
    %v1758 = vld [vmem:[#allocation4 + $0x328] sm:$0xff]
    %v1759 = vld [vmem:[#allocation4 + $0x330] sm:$0xff]
    %v1760 = vld [vmem:[#allocation4 + $0x338] sm:$0xff]
    %v1761 = vld [vmem:[#allocation4 + $0x340] sm:$0xff]
    %v1762 = vld [vmem:[#allocation4 + $0x348] sm:$0xff]
    %v1763 = vld [vmem:[#allocation4 + $0x350] sm:$0xff]
    %v1764 = vld [vmem:[#allocation4 + $0x358] sm:$0xff]
    %v1765 = vld [vmem:[#allocation4 + $0x360] sm:$0xff]
    %v1766 = vld [vmem:[#allocation4 + $0x368] sm:$0xff]
    %v1767 = vld [vmem:[#allocation4 + $0x370] sm:$0xff]
    %v1768 = vld [vmem:[#allocation4 + $0x378] sm:$0xff]
    %v1769 = vld [vmem:[#allocation4 + $0x380] sm:$0xff]
    %v1770 = vld [vmem:[#allocation4 + $0x388] sm:$0xff]
    %v1771 = vld [vmem:[#allocation4 + $0x390] sm:$0xff]
    %v1772 = vld [vmem:[#allocation4 + $0x398] sm:$0xff]
    %v1773 = vld [vmem:[#allocation4 + $0x3a0] sm:$0xff]
    %v1774 = vld [vmem:[#allocation4 + $0x3a8] sm:$0xff]
    %v1775 = vld [vmem:[#allocation4 + $0x3b0] sm:$0xff]
    %v1776 = vld [vmem:[#allocation4 + $0x3b8] sm:$0xff]
    %v1777 = vld [vmem:[#allocation4 + $0x3c0] sm:$0xff]
    %v1778 = vld [vmem:[#allocation4 + $0x3c8] sm:$0xff]
    %v1779 = vld [vmem:[#allocation4 + $0x3d0] sm:$0xff]
    %v1780 = vld [vmem:[#allocation4 + $0x3d8] sm:$0xff]
    %v1781 = vld [vmem:[#allocation4 + $0x3e0] sm:$0xff]
    %v1782 = vld [vmem:[#allocation4 + $0x3e8] sm:$0xff]
    %v1783 = vld [vmem:[#allocation4 + $0x3f0] sm:$0xff]
    %v1784 = vld [vmem:[#allocation4 + $0x3f8] sm:$0xff]
    %v1785 = vld [vmem:[%s4] sm:$0xf]
    %v1787 = vlaneseq
    %v1788 = vshrl.u32 %v1787, 7
    %v1789 = vsub.s32 0, %v1788
    %v1790 = vrot.slane %v1785, %v1789
    %v1791 = vlaneseq
    %v1792 = vshrl.u32 %v1791, 7
    %v1793 = vsub.s32 1, %v1792
    %v1794 = vrot.slane %v1785, %v1793
    %v1795 = vlaneseq
    %v1796 = vshrl.u32 %v1795, 7
    %v1797 = vsub.s32 2, %v1796
    %v1798 = vrot.slane %v1785, %v1797
    %v1799 = vlaneseq
    %v1800 = vshrl.u32 %v1799, 7
    %v1801 = vsub.s32 3, %v1800
    %v1802 = vrot.slane %v1785, %v1801
    %v1935 = vunpack.c.l.b16 %v1657
    %v1936 = vunpack.c.h.b16 %v1657
    %v1937 = vunpack.c.l.b16 %v1658
    %v1938 = vunpack.c.h.b16 %v1658
    %v1939 = vunpack.c.l.b16 %v1659
    %v1940 = vunpack.c.h.b16 %v1659
    %v1941 = vunpack.c.l.b16 %v1660
    %v1942 = vunpack.c.h.b16 %v1660
    %v1943 = vunpack.c.l.b16 %v1661
    %v1944 = vunpack.c.h.b16 %v1661
    %v1945 = vunpack.c.l.b16 %v1662
    %v1946 = vunpack.c.h.b16 %v1662
    %v1947 = vunpack.c.l.b16 %v1663
    %v1948 = vunpack.c.h.b16 %v1663
    %v1949 = vunpack.c.l.b16 %v1664
    %v1950 = vunpack.c.h.b16 %v1664
    %v1951 = vunpack.c.l.b16 %v1665
    %v1952 = vunpack.c.h.b16 %v1665
    %v1953 = vunpack.c.l.b16 %v1666
    %v1954 = vunpack.c.h.b16 %v1666
    %v1955 = vunpack.c.l.b16 %v1667
    %v1956 = vunpack.c.h.b16 %v1667
    %v1957 = vunpack.c.l.b16 %v1668
    %v1958 = vunpack.c.h.b16 %v1668
    %v1959 = vunpack.c.l.b16 %v1669
    %v1960 = vunpack.c.h.b16 %v1669
    %v1961 = vunpack.c.l.b16 %v1670
    %v1962 = vunpack.c.h.b16 %v1670
    %v1963 = vunpack.c.l.b16 %v1671
    %v1964 = vunpack.c.h.b16 %v1671
    %v1965 = vunpack.c.l.b16 %v1672
    %v1966 = vunpack.c.h.b16 %v1672
    %v1967 = vunpack.c.l.b16 %v1673
    %v1968 = vunpack.c.h.b16 %v1673
    %v1969 = vunpack.c.l.b16 %v1674
    %v1970 = vunpack.c.h.b16 %v1674
    %v1971 = vunpack.c.l.b16 %v1675
    %v1972 = vunpack.c.h.b16 %v1675
    %v1973 = vunpack.c.l.b16 %v1676
    %v1974 = vunpack.c.h.b16 %v1676
    %v1975 = vunpack.c.l.b16 %v1677
    %v1976 = vunpack.c.h.b16 %v1677
    %v1977 = vunpack.c.l.b16 %v1678
    %v1978 = vunpack.c.h.b16 %v1678
    %v1979 = vunpack.c.l.b16 %v1679
    %v1980 = vunpack.c.h.b16 %v1679
    %v1981 = vunpack.c.l.b16 %v1680
    %v1982 = vunpack.c.h.b16 %v1680
    %v1983 = vunpack.c.l.b16 %v1681
    %v1984 = vunpack.c.h.b16 %v1681
    %v1985 = vunpack.c.l.b16 %v1682
    %v1986 = vunpack.c.h.b16 %v1682
    %v1987 = vunpack.c.l.b16 %v1683
    %v1988 = vunpack.c.h.b16 %v1683
    %v1989 = vunpack.c.l.b16 %v1684
    %v1990 = vunpack.c.h.b16 %v1684
    %v1991 = vunpack.c.l.b16 %v1685
    %v1992 = vunpack.c.h.b16 %v1685
    %v1993 = vunpack.c.l.b16 %v1686
    %v1994 = vunpack.c.h.b16 %v1686
    %v1995 = vunpack.c.l.b16 %v1687
    %v1996 = vunpack.c.h.b16 %v1687
    %v1997 = vunpack.c.l.b16 %v1688
    %v1998 = vunpack.c.h.b16 %v1688
    %v1999 = vunpack.c.l.b16 %v1689
    %v2000 = vunpack.c.h.b16 %v1689
    %v2001 = vunpack.c.l.b16 %v1690
    %v2002 = vunpack.c.h.b16 %v1690
    %v2003 = vunpack.c.l.b16 %v1691
    %v2004 = vunpack.c.h.b16 %v1691
    %v2005 = vunpack.c.l.b16 %v1692
    %v2006 = vunpack.c.h.b16 %v1692
    %v2007 = vunpack.c.l.b16 %v1693
    %v2008 = vunpack.c.h.b16 %v1693
    %v2009 = vunpack.c.l.b16 %v1694
    %v2010 = vunpack.c.h.b16 %v1694
    %v2011 = vunpack.c.l.b16 %v1695
    %v2012 = vunpack.c.h.b16 %v1695
    %v2013 = vunpack.c.l.b16 %v1696
    %v2014 = vunpack.c.h.b16 %v1696
    %v2015 = vunpack.c.l.b16 %v1697
    %v2016 = vunpack.c.h.b16 %v1697
    %v2017 = vunpack.c.l.b16 %v1698
    %v2018 = vunpack.c.h.b16 %v1698
    %v2019 = vunpack.c.l.b16 %v1699
    %v2020 = vunpack.c.h.b16 %v1699
    %v2021 = vunpack.c.l.b16 %v1700
    %v2022 = vunpack.c.h.b16 %v1700
    %v2023 = vunpack.c.l.b16 %v1701
    %v2024 = vunpack.c.h.b16 %v1701
    %v2025 = vunpack.c.l.b16 %v1702
    %v2026 = vunpack.c.h.b16 %v1702
    %v2027 = vunpack.c.l.b16 %v1703
    %v2028 = vunpack.c.h.b16 %v1703
    %v2029 = vunpack.c.l.b16 %v1704
    %v2030 = vunpack.c.h.b16 %v1704
    %v2031 = vunpack.c.l.b16 %v1705
    %v2032 = vunpack.c.h.b16 %v1705
    %v2033 = vunpack.c.l.b16 %v1706
    %v2034 = vunpack.c.h.b16 %v1706
    %v2035 = vunpack.c.l.b16 %v1707
    %v2036 = vunpack.c.h.b16 %v1707
    %v2037 = vunpack.c.l.b16 %v1708
    %v2038 = vunpack.c.h.b16 %v1708
    %v2039 = vunpack.c.l.b16 %v1709
    %v2040 = vunpack.c.h.b16 %v1709
    %v2041 = vunpack.c.l.b16 %v1710
    %v2042 = vunpack.c.h.b16 %v1710
    %v2043 = vunpack.c.l.b16 %v1711
    %v2044 = vunpack.c.h.b16 %v1711
    %v2045 = vunpack.c.l.b16 %v1712
    %v2046 = vunpack.c.h.b16 %v1712
    %v2047 = vunpack.c.l.b16 %v1713
    %v2048 = vunpack.c.h.b16 %v1713
    %v2049 = vunpack.c.l.b16 %v1714
    %v2050 = vunpack.c.h.b16 %v1714
    %v2051 = vunpack.c.l.b16 %v1715
    %v2052 = vunpack.c.h.b16 %v1715
    %v2053 = vunpack.c.l.b16 %v1716
    %v2054 = vunpack.c.h.b16 %v1716
    %v2055 = vunpack.c.l.b16 %v1717
    %v2056 = vunpack.c.h.b16 %v1717
    %v2057 = vunpack.c.l.b16 %v1718
    %v2058 = vunpack.c.h.b16 %v1718
    %v2059 = vunpack.c.l.b16 %v1719
    %v2060 = vunpack.c.h.b16 %v1719
    %v2061 = vunpack.c.l.b16 %v1720
    %v2062 = vunpack.c.h.b16 %v1720
    %v2063 = vunpack.c.l.b16 %v1721
    %v2064 = vunpack.c.h.b16 %v1721
    %v2065 = vunpack.c.l.b16 %v1722
    %v2066 = vunpack.c.h.b16 %v1722
    %v2067 = vunpack.c.l.b16 %v1723
    %v2068 = vunpack.c.h.b16 %v1723
    %v2069 = vunpack.c.l.b16 %v1724
    %v2070 = vunpack.c.h.b16 %v1724
    %v2071 = vunpack.c.l.b16 %v1725
    %v2072 = vunpack.c.h.b16 %v1725
    %v2073 = vunpack.c.l.b16 %v1726
    %v2074 = vunpack.c.h.b16 %v1726
    %v2075 = vunpack.c.l.b16 %v1727
    %v2076 = vunpack.c.h.b16 %v1727
    %v2077 = vunpack.c.l.b16 %v1728
    %v2078 = vunpack.c.h.b16 %v1728
    %v2079 = vunpack.c.l.b16 %v1729
    %v2080 = vunpack.c.h.b16 %v1729
    %v2081 = vunpack.c.l.b16 %v1730
    %v2082 = vunpack.c.h.b16 %v1730
    %v2083 = vunpack.c.l.b16 %v1731
    %v2084 = vunpack.c.h.b16 %v1731
    %v2085 = vunpack.c.l.b16 %v1732
    %v2086 = vunpack.c.h.b16 %v1732
    %v2087 = vunpack.c.l.b16 %v1733
    %v2088 = vunpack.c.h.b16 %v1733
    %v2089 = vunpack.c.l.b16 %v1734
    %v2090 = vunpack.c.h.b16 %v1734
    %v2091 = vunpack.c.l.b16 %v1735
    %v2092 = vunpack.c.h.b16 %v1735
    %v2093 = vunpack.c.l.b16 %v1736
    %v2094 = vunpack.c.h.b16 %v1736
    %v2095 = vunpack.c.l.b16 %v1737
    %v2096 = vunpack.c.h.b16 %v1737
    %v2097 = vunpack.c.l.b16 %v1738
    %v2098 = vunpack.c.h.b16 %v1738
    %v2099 = vunpack.c.l.b16 %v1739
    %v2100 = vunpack.c.h.b16 %v1739
    %v2101 = vunpack.c.l.b16 %v1740
    %v2102 = vunpack.c.h.b16 %v1740
    %v2103 = vunpack.c.l.b16 %v1741
    %v2104 = vunpack.c.h.b16 %v1741
    %v2105 = vunpack.c.l.b16 %v1742
    %v2106 = vunpack.c.h.b16 %v1742
    %v2107 = vunpack.c.l.b16 %v1743
    %v2108 = vunpack.c.h.b16 %v1743
    %v2109 = vunpack.c.l.b16 %v1744
    %v2110 = vunpack.c.h.b16 %v1744
    %v2111 = vunpack.c.l.b16 %v1745
    %v2112 = vunpack.c.h.b16 %v1745
    %v2113 = vunpack.c.l.b16 %v1746
    %v2114 = vunpack.c.h.b16 %v1746
    %v2115 = vunpack.c.l.b16 %v1747
    %v2116 = vunpack.c.h.b16 %v1747
    %v2117 = vunpack.c.l.b16 %v1748
    %v2118 = vunpack.c.h.b16 %v1748
    %v2119 = vunpack.c.l.b16 %v1749
    %v2120 = vunpack.c.h.b16 %v1749
    %v2121 = vunpack.c.l.b16 %v1750
    %v2122 = vunpack.c.h.b16 %v1750
    %v2123 = vunpack.c.l.b16 %v1751
    %v2124 = vunpack.c.h.b16 %v1751
    %v2125 = vunpack.c.l.b16 %v1752
    %v2126 = vunpack.c.h.b16 %v1752
    %v2127 = vunpack.c.l.b16 %v1753
    %v2128 = vunpack.c.h.b16 %v1753
    %v2129 = vunpack.c.l.b16 %v1754
    %v2130 = vunpack.c.h.b16 %v1754
    %v2131 = vunpack.c.l.b16 %v1755
    %v2132 = vunpack.c.h.b16 %v1755
    %v2133 = vunpack.c.l.b16 %v1756
    %v2134 = vunpack.c.h.b16 %v1756
    %v2135 = vunpack.c.l.b16 %v1757
    %v2136 = vunpack.c.h.b16 %v1757
    %v2137 = vunpack.c.l.b16 %v1758
    %v2138 = vunpack.c.h.b16 %v1758
    %v2139 = vunpack.c.l.b16 %v1759
    %v2140 = vunpack.c.h.b16 %v1759
    %v2141 = vunpack.c.l.b16 %v1760
    %v2142 = vunpack.c.h.b16 %v1760
    %v2143 = vunpack.c.l.b16 %v1761
    %v2144 = vunpack.c.h.b16 %v1761
    %v2145 = vunpack.c.l.b16 %v1762
    %v2146 = vunpack.c.h.b16 %v1762
    %v2147 = vunpack.c.l.b16 %v1763
    %v2148 = vunpack.c.h.b16 %v1763
    %v2149 = vunpack.c.l.b16 %v1764
    %v2150 = vunpack.c.h.b16 %v1764
    %v2151 = vunpack.c.l.b16 %v1765
    %v2152 = vunpack.c.h.b16 %v1765
    %v2153 = vunpack.c.l.b16 %v1766
    %v2154 = vunpack.c.h.b16 %v1766
    %v2155 = vunpack.c.l.b16 %v1767
    %v2156 = vunpack.c.h.b16 %v1767
    %v2157 = vunpack.c.l.b16 %v1768
    %v2158 = vunpack.c.h.b16 %v1768
    %v2159 = vunpack.c.l.b16 %v1769
    %v2160 = vunpack.c.h.b16 %v1769
    %v2161 = vunpack.c.l.b16 %v1770
    %v2162 = vunpack.c.h.b16 %v1770
    %v2163 = vunpack.c.l.b16 %v1771
    %v2164 = vunpack.c.h.b16 %v1771
    %v2165 = vunpack.c.l.b16 %v1772
    %v2166 = vunpack.c.h.b16 %v1772
    %v2167 = vunpack.c.l.b16 %v1773
    %v2168 = vunpack.c.h.b16 %v1773
    %v2169 = vunpack.c.l.b16 %v1774
    %v2170 = vunpack.c.h.b16 %v1774
    %v2171 = vunpack.c.l.b16 %v1775
    %v2172 = vunpack.c.h.b16 %v1775
    %v2173 = vunpack.c.l.b16 %v1776
    %v2174 = vunpack.c.h.b16 %v1776
    %v2175 = vunpack.c.l.b16 %v1777
    %v2176 = vunpack.c.h.b16 %v1777
    %v2177 = vunpack.c.l.b16 %v1778
    %v2178 = vunpack.c.h.b16 %v1778
    %v2179 = vunpack.c.l.b16 %v1779
    %v2180 = vunpack.c.h.b16 %v1779
    %v2181 = vunpack.c.l.b16 %v1780
    %v2182 = vunpack.c.h.b16 %v1780
    %v2183 = vunpack.c.l.b16 %v1781
    %v2184 = vunpack.c.h.b16 %v1781
    %v2185 = vunpack.c.l.b16 %v1782
    %v2186 = vunpack.c.h.b16 %v1782
    %v2187 = vunpack.c.l.b16 %v1783
    %v2188 = vunpack.c.h.b16 %v1783
    %v2189 = vunpack.c.l.b16 %v1784
    %v2190 = vunpack.c.h.b16 %v1784
    %v2191 = vpack.c.b16 %v1939, %v1935
    %v2192 = vpack.c.b16 %v1940, %v1936
    %v2193 = vpack.c.b16 %v1941, %v1937
    %v2194 = vpack.c.b16 %v1942, %v1938
    %v2195 = vpack.c.b16 %v1947, %v1943
    %v2196 = vpack.c.b16 %v1948, %v1944
    %v2197 = vpack.c.b16 %v1949, %v1945
    %v2198 = vpack.c.b16 %v1950, %v1946
    %v2199 = vpack.c.b16 %v1955, %v1951
    %v2200 = vpack.c.b16 %v1956, %v1952
    %v2201 = vpack.c.b16 %v1957, %v1953
    %v2202 = vpack.c.b16 %v1958, %v1954
    %v2203 = vpack.c.b16 %v1963, %v1959
    %v2204 = vpack.c.b16 %v1964, %v1960
    %v2205 = vpack.c.b16 %v1965, %v1961
    %v2206 = vpack.c.b16 %v1966, %v1962
    %v2207 = vpack.c.b16 %v1971, %v1967
    %v2208 = vpack.c.b16 %v1972, %v1968
    %v2209 = vpack.c.b16 %v1973, %v1969
    %v2210 = vpack.c.b16 %v1974, %v1970
    %v2211 = vpack.c.b16 %v1979, %v1975
    %v2212 = vpack.c.b16 %v1980, %v1976
    %v2213 = vpack.c.b16 %v1981, %v1977
    %v2214 = vpack.c.b16 %v1982, %v1978
    %v2215 = vpack.c.b16 %v1987, %v1983
    %v2216 = vpack.c.b16 %v1988, %v1984
    %v2217 = vpack.c.b16 %v1989, %v1985
    %v2218 = vpack.c.b16 %v1990, %v1986
    %v2219 = vpack.c.b16 %v1995, %v1991
    %v2220 = vpack.c.b16 %v1996, %v1992
    %v2221 = vpack.c.b16 %v1997, %v1993
    %v2222 = vpack.c.b16 %v1998, %v1994
    %v2223 = vpack.c.b16 %v2003, %v1999
    %v2224 = vpack.c.b16 %v2004, %v2000
    %v2225 = vpack.c.b16 %v2005, %v2001
    %v2226 = vpack.c.b16 %v2006, %v2002
    %v2227 = vpack.c.b16 %v2011, %v2007
    %v2228 = vpack.c.b16 %v2012, %v2008
    %v2229 = vpack.c.b16 %v2013, %v2009
    %v2230 = vpack.c.b16 %v2014, %v2010
    %v2231 = vpack.c.b16 %v2019, %v2015
    %v2232 = vpack.c.b16 %v2020, %v2016
    %v2233 = vpack.c.b16 %v2021, %v2017
    %v2234 = vpack.c.b16 %v2022, %v2018
    %v2235 = vpack.c.b16 %v2027, %v2023
    %v2236 = vpack.c.b16 %v2028, %v2024
    %v2237 = vpack.c.b16 %v2029, %v2025
    %v2238 = vpack.c.b16 %v2030, %v2026
    %v2239 = vpack.c.b16 %v2035, %v2031
    %v2240 = vpack.c.b16 %v2036, %v2032
    %v2241 = vpack.c.b16 %v2037, %v2033
    %v2242 = vpack.c.b16 %v2038, %v2034
    %v2243 = vpack.c.b16 %v2043, %v2039
    %v2244 = vpack.c.b16 %v2044, %v2040
    %v2245 = vpack.c.b16 %v2045, %v2041
    %v2246 = vpack.c.b16 %v2046, %v2042
    %v2247 = vpack.c.b16 %v2051, %v2047
    %v2248 = vpack.c.b16 %v2052, %v2048
    %v2249 = vpack.c.b16 %v2053, %v2049
    %v2250 = vpack.c.b16 %v2054, %v2050
    %v2251 = vpack.c.b16 %v2059, %v2055
    %v2252 = vpack.c.b16 %v2060, %v2056
    %v2253 = vpack.c.b16 %v2061, %v2057
    %v2254 = vpack.c.b16 %v2062, %v2058
    %v2255 = vpack.c.b16 %v2067, %v2063
    %v2256 = vpack.c.b16 %v2068, %v2064
    %v2257 = vpack.c.b16 %v2069, %v2065
    %v2258 = vpack.c.b16 %v2070, %v2066
    %v2259 = vpack.c.b16 %v2075, %v2071
    %v2260 = vpack.c.b16 %v2076, %v2072
    %v2261 = vpack.c.b16 %v2077, %v2073
    %v2262 = vpack.c.b16 %v2078, %v2074
    %v2263 = vpack.c.b16 %v2083, %v2079
    %v2264 = vpack.c.b16 %v2084, %v2080
    %v2265 = vpack.c.b16 %v2085, %v2081
    %v2266 = vpack.c.b16 %v2086, %v2082
    %v2267 = vpack.c.b16 %v2091, %v2087
    %v2268 = vpack.c.b16 %v2092, %v2088
    %v2269 = vpack.c.b16 %v2093, %v2089
    %v2270 = vpack.c.b16 %v2094, %v2090
    %v2271 = vpack.c.b16 %v2099, %v2095
    %v2272 = vpack.c.b16 %v2100, %v2096
    %v2273 = vpack.c.b16 %v2101, %v2097
    %v2274 = vpack.c.b16 %v2102, %v2098
    %v2275 = vpack.c.b16 %v2107, %v2103
    %v2276 = vpack.c.b16 %v2108, %v2104
    %v2277 = vpack.c.b16 %v2109, %v2105
    %v2278 = vpack.c.b16 %v2110, %v2106
    %v2279 = vpack.c.b16 %v2115, %v2111
    %v2280 = vpack.c.b16 %v2116, %v2112
    %v2281 = vpack.c.b16 %v2117, %v2113
    %v2282 = vpack.c.b16 %v2118, %v2114
    %v2283 = vpack.c.b16 %v2123, %v2119
    %v2284 = vpack.c.b16 %v2124, %v2120
    %v2285 = vpack.c.b16 %v2125, %v2121
    %v2286 = vpack.c.b16 %v2126, %v2122
    %v2287 = vpack.c.b16 %v2131, %v2127
    %v2288 = vpack.c.b16 %v2132, %v2128
    %v2289 = vpack.c.b16 %v2133, %v2129
    %v2290 = vpack.c.b16 %v2134, %v2130
    %v2291 = vpack.c.b16 %v2139, %v2135
    %v2292 = vpack.c.b16 %v2140, %v2136
    %v2293 = vpack.c.b16 %v2141, %v2137
    %v2294 = vpack.c.b16 %v2142, %v2138
    %v2295 = vpack.c.b16 %v2147, %v2143
    %v2296 = vpack.c.b16 %v2148, %v2144
    %v2297 = vpack.c.b16 %v2149, %v2145
    %v2298 = vpack.c.b16 %v2150, %v2146
    %v2299 = vpack.c.b16 %v2155, %v2151
    %v2300 = vpack.c.b16 %v2156, %v2152
    %v2301 = vpack.c.b16 %v2157, %v2153
    %v2302 = vpack.c.b16 %v2158, %v2154
    %v2303 = vpack.c.b16 %v2163, %v2159
    %v2304 = vpack.c.b16 %v2164, %v2160
    %v2305 = vpack.c.b16 %v2165, %v2161
    %v2306 = vpack.c.b16 %v2166, %v2162
    %v2307 = vpack.c.b16 %v2171, %v2167
    %v2308 = vpack.c.b16 %v2172, %v2168
    %v2309 = vpack.c.b16 %v2173, %v2169
    %v2310 = vpack.c.b16 %v2174, %v2170
    %v2311 = vpack.c.b16 %v2179, %v2175
    %v2312 = vpack.c.b16 %v2180, %v2176
    %v2313 = vpack.c.b16 %v2181, %v2177
    %v2314 = vpack.c.b16 %v2182, %v2178
    %v2315 = vpack.c.b16 %v2187, %v2183
    %v2316 = vpack.c.b16 %v2188, %v2184
    %v2317 = vpack.c.b16 %v2189, %v2185
    %v2318 = vpack.c.b16 %v2190, %v2186
    %2447 = vmatprep.subr.bf16.mxu0 %v2192
    %2448 = vmatpush1.bf16.msra.mxu0 %v2191
    %2449 = vmatprep.subr.bf16.mxu0 %v2196
    %2450 = vmatpush1.bf16.msra.mxu0 %v2195
    %2451 = vmatprep.subr.bf16.mxu0 %v2200
    %2452 = vmatpush1.bf16.msra.mxu0 %v2199
    %2453 = vmatprep.subr.bf16.mxu0 %v2204
    %2454 = vmatpush1.bf16.msra.mxu0 %v2203
    %2455 = vmatprep.subr.bf16.mxu0 %v2208
    %2456 = vmatpush1.bf16.msra.mxu0 %v2207
    %2457 = vmatprep.subr.bf16.mxu0 %v2212
    %2458 = vmatpush1.bf16.msra.mxu0 %v2211
    %2459 = vmatprep.subr.bf16.mxu0 %v2216
    %2460 = vmatpush1.bf16.msra.mxu0 %v2215
    %2461 = vmatprep.subr.bf16.mxu0 %v2220
    %2462 = vmatpush1.bf16.msra.mxu0 %v2219
    %2463 = vmatprep.subr.bf16.mxu0 %v2224
    %2464 = vmatpush1.bf16.msra.mxu0 %v2223
    %2465 = vmatprep.subr.bf16.mxu0 %v2228
    %2466 = vmatpush1.bf16.msra.mxu0 %v2227
    %2467 = vmatprep.subr.bf16.mxu0 %v2232
    %2468 = vmatpush1.bf16.msra.mxu0 %v2231
    %2469 = vmatprep.subr.bf16.mxu0 %v2236
    %2470 = vmatpush1.bf16.msra.mxu0 %v2235
    %2471 = vmatprep.subr.bf16.mxu0 %v2240
    %2472 = vmatpush1.bf16.msra.mxu0 %v2239
    %2473 = vmatprep.subr.bf16.mxu0 %v2244
    %2474 = vmatpush1.bf16.msra.mxu0 %v2243
    %2475 = vmatprep.subr.bf16.mxu0 %v2248
    %2476 = vmatpush1.bf16.msra.mxu0 %v2247
    %2477 = vmatprep.subr.bf16.mxu0 %v2252
    %2478 = vmatpush1.bf16.msra.mxu0 %v2251
    %2479 = vmatprep.mubr.bf16.mxu0 %v1654
    %2480 = vmatmul.mubr.bf16.gmra.mrb[0].mxu0 %v1653
    %v2481 = vpop.f32.mrb[0].mxu0
    %v2482 = vadd.f32 %v1790, %v2481
    %v2483 = vpop.f32.mrb[0].mxu0
    %v2484 = vadd.f32 %v1794, %v2483
    %v2485 = vpop.f32.mrb[0].mxu0
    %v2486 = vpop.f32.mrb[0].mxu0
    %2487 = vdwg.mxu0
    %2488 = vmatprep.subr.bf16.mxu0 %v2256
    %2489 = vmatpush1.bf16.msra.mxu0 %v2255
    %2490 = vmatprep.subr.bf16.mxu0 %v2260
    %2491 = vmatpush1.bf16.msra.mxu0 %v2259
    %2492 = vmatprep.subr.bf16.mxu0 %v2264
    %2493 = vmatpush1.bf16.msra.mxu0 %v2263
    %2494 = vmatprep.subr.bf16.mxu0 %v2268
    %2495 = vmatpush1.bf16.msra.mxu0 %v2267
    %2496 = vmatprep.subr.bf16.mxu0 %v2272
    %2497 = vmatpush1.bf16.msra.mxu0 %v2271
    %2498 = vmatprep.subr.bf16.mxu0 %v2276
    %2499 = vmatpush1.bf16.msra.mxu0 %v2275
    %2500 = vmatprep.subr.bf16.mxu0 %v2280
    %2501 = vmatpush1.bf16.msra.mxu0 %v2279
    %2502 = vmatprep.subr.bf16.mxu0 %v2284
    %2503 = vmatpush1.bf16.msra.mxu0 %v2283
    %2504 = vmatprep.subr.bf16.mxu0 %v2288
    %2505 = vmatpush1.bf16.msra.mxu0 %v2287
    %2506 = vmatprep.subr.bf16.mxu0 %v2292
    %2507 = vmatpush1.bf16.msra.mxu0 %v2291
    %2508 = vmatprep.subr.bf16.mxu0 %v2296
    %2509 = vmatpush1.bf16.msra.mxu0 %v2295
    %2510 = vmatprep.subr.bf16.mxu0 %v2300
    %2511 = vmatpush1.bf16.msra.mxu0 %v2299
    %2512 = vmatprep.subr.bf16.mxu0 %v2304
    %2513 = vmatpush1.bf16.msra.mxu0 %v2303
    %2514 = vmatprep.subr.bf16.mxu0 %v2308
    %2515 = vmatpush1.bf16.msra.mxu0 %v2307
    %2516 = vmatprep.subr.bf16.mxu0 %v2312
    %2517 = vmatpush1.bf16.msra.mxu0 %v2311
    %2518 = vmatprep.subr.bf16.mxu0 %v2316
    %2519 = vmatpush1.bf16.msra.mxu0 %v2315
    %2520 = vmatprep.mubr.bf16.mxu0 %v1656
    %2521 = vmatmul.mubr.bf16.gmra.mrb[0].mxu0 %v1655
    %v2522 = vpop.f32.mrb[0].mxu0
    %v2523 = vadd.f32 %v2482, %v2522
    %v2524 = vpop.f32.mrb[0].mxu0
    %v2525 = vadd.f32 %v2484, %v2524
    %v2526 = vpop.f32.mrb[0].mxu0
    %v2527 = vpop.f32.mrb[0].mxu0
    %2528 = vdwg.mxu0
    %2529 = vmatprep.subr.bf16.mxu0 %v2194
    %2530 = vmatpush1.bf16.msra.mxu0 %v2193
    %2531 = vmatprep.subr.bf16.mxu0 %v2198
    %2532 = vmatpush1.bf16.msra.mxu0 %v2197
    %2533 = vmatprep.subr.bf16.mxu0 %v2202
    %2534 = vmatpush1.bf16.msra.mxu0 %v2201
    %2535 = vmatprep.subr.bf16.mxu0 %v2206
    %2536 = vmatpush1.bf16.msra.mxu0 %v2205
    %2537 = vmatprep.subr.bf16.mxu0 %v2210
    %2538 = vmatpush1.bf16.msra.mxu0 %v2209
    %2539 = vmatprep.subr.bf16.mxu0 %v2214
    %2540 = vmatpush1.bf16.msra.mxu0 %v2213
    %2541 = vmatprep.subr.bf16.mxu0 %v2218
    %2542 = vmatpush1.bf16.msra.mxu0 %v2217
    %2543 = vmatprep.subr.bf16.mxu0 %v2222
    %2544 = vmatpush1.bf16.msra.mxu0 %v2221
    %2545 = vmatprep.subr.bf16.mxu0 %v2226
    %2546 = vmatpush1.bf16.msra.mxu0 %v2225
    %2547 = vmatprep.subr.bf16.mxu0 %v2230
    %2548 = vmatpush1.bf16.msra.mxu0 %v2229
    %2549 = vmatprep.subr.bf16.mxu0 %v2234
    %2550 = vmatpush1.bf16.msra.mxu0 %v2233
    %2551 = vmatprep.subr.bf16.mxu0 %v2238
    %2552 = vmatpush1.bf16.msra.mxu0 %v2237
    %2553 = vmatprep.subr.bf16.mxu0 %v2242
    %2554 = vmatpush1.bf16.msra.mxu0 %v2241
    %2555 = vmatprep.subr.bf16.mxu0 %v2246
    %2556 = vmatpush1.bf16.msra.mxu0 %v2245
    %2557 = vmatprep.subr.bf16.mxu0 %v2250
    %2558 = vmatpush1.bf16.msra.mxu0 %v2249
    %2559 = vmatprep.subr.bf16.mxu0 %v2254
    %2560 = vmatpush1.bf16.msra.mxu0 %v2253
    %2561 = vmatprep.mubr.bf16.mxu0 %v1654
    %2562 = vmatmul.mubr.bf16.gmra.mrb[0].mxu0 %v1653
    %v2563 = vpop.f32.mrb[0].mxu0
    %v2564 = vadd.f32 %v1798, %v2563
    %v2565 = vpop.f32.mrb[0].mxu0
    %v2566 = vadd.f32 %v1802, %v2565
    %v2567 = vpop.f32.mrb[0].mxu0
    %v2568 = vpop.f32.mrb[0].mxu0
    %2569 = vdwg.mxu0
    %2570 = vmatprep.subr.bf16.mxu0 %v2258
    %2571 = vmatpush1.bf16.msra.mxu0 %v2257
    %2572 = vmatprep.subr.bf16.mxu0 %v2262
    %2573 = vmatpush1.bf16.msra.mxu0 %v2261
    %2574 = vmatprep.subr.bf16.mxu0 %v2266
    %2575 = vmatpush1.bf16.msra.mxu0 %v2265
    %2576 = vmatprep.subr.bf16.mxu0 %v2270
    %2577 = vmatpush1.bf16.msra.mxu0 %v2269
    %2578 = vmatprep.subr.bf16.mxu0 %v2274
    %2579 = vmatpush1.bf16.msra.mxu0 %v2273
    %2580 = vmatprep.subr.bf16.mxu0 %v2278
    %2581 = vmatpush1.bf16.msra.mxu0 %v2277
    %2582 = vmatprep.subr.bf16.mxu0 %v2282
    %2583 = vmatpush1.bf16.msra.mxu0 %v2281
    %2584 = vmatprep.subr.bf16.mxu0 %v2286
    %2585 = vmatpush1.bf16.msra.mxu0 %v2285
    %2586 = vmatprep.subr.bf16.mxu0 %v2290
    %2587 = vmatpush1.bf16.msra.mxu0 %v2289
    %2588 = vmatprep.subr.bf16.mxu0 %v2294
    %2589 = vmatpush1.bf16.msra.mxu0 %v2293
    %2590 = vmatprep.subr.bf16.mxu0 %v2298
    %2591 = vmatpush1.bf16.msra.mxu0 %v2297
    %2592 = vmatprep.subr.bf16.mxu0 %v2302
    %2593 = vmatpush1.bf16.msra.mxu0 %v2301
    %2594 = vmatprep.subr.bf16.mxu0 %v2306
    %2595 = vmatpush1.bf16.msra.mxu0 %v2305
    %2596 = vmatprep.subr.bf16.mxu0 %v2310
    %2597 = vmatpush1.bf16.msra.mxu0 %v2309
    %2598 = vmatprep.subr.bf16.mxu0 %v2314
    %2599 = vmatpush1.bf16.msra.mxu0 %v2313
    %2600 = vmatprep.subr.bf16.mxu0 %v2318
    %2601 = vmatpush1.bf16.msra.mxu0 %v2317
    %2602 = vmatprep.mubr.bf16.mxu0 %v1656
    %2603 = vmatmul.mubr.bf16.gmra.mrb[0].mxu0 %v1655
    %v2604 = vpop.f32.mrb[0].mxu0
    %v2605 = vadd.f32 %v2564, %v2604
    %v2606 = vpop.f32.mrb[0].mxu0
    %v2607 = vadd.f32 %v2566, %v2606
    %v2608 = vpop.f32.mrb[0].mxu0
    %v2609 = vpop.f32.mrb[0].mxu0
    %2610 = vdwg.mxu0
    %v2611 = vmax.f32 %v2523, 0.0
    %v2612 = vmax.f32 %v2525, 0.0
    %v2613 = vmax.f32 %v2605, 0.0
    %v2614 = vmax.f32 %v2607, 0.0
    %v2615 = vpack.c.bf16 %v2611, %v2611
    %v2616 = vpack.c.bf16 %v2612, %v2612
    %v2617 = vpack.c.bf16 %v2613, %v2613
    %v2618 = vpack.c.bf16 %v2614, %v2614
    %v2619 = vld [vmem:[#allocation6] sm:$0xf]
    %v2620 = vld [vmem:[#allocation6 + $0x4] sm:$0xf]
    %v2621 = vld [vmem:[#allocation6 + $0x8] sm:$0xf]
    %v2622 = vld [vmem:[#allocation6 + $0xc] sm:$0xf]
    %v2623 = vld [vmem:[#allocation6 + $0x10] sm:$0xf]
    %v2624 = vld [vmem:[#allocation6 + $0x14] sm:$0xf]
    %v2625 = vld [vmem:[#allocation6 + $0x18] sm:$0xf]
    %v2626 = vld [vmem:[#allocation6 + $0x1c] sm:$0xf]
    %v2627 = vld [vmem:[#allocation6 + $0x20] sm:$0xf]
    %v2628 = vld [vmem:[#allocation6 + $0x24] sm:$0xf]
    %v2629 = vld [vmem:[#allocation6 + $0x28] sm:$0xf]
    %v2630 = vld [vmem:[#allocation6 + $0x2c] sm:$0xf]
    %v2631 = vld [vmem:[#allocation6 + $0x30] sm:$0xf]
    %v2632 = vld [vmem:[#allocation6 + $0x34] sm:$0xf]
    %v2633 = vld [vmem:[#allocation6 + $0x38] sm:$0xf]
    %v2634 = vld [vmem:[#allocation6 + $0x3c] sm:$0xf]
    %v2635 = vld [vmem:[#allocation6 + $0x40] sm:$0xf]
    %v2636 = vld [vmem:[#allocation6 + $0x44] sm:$0xf]
    %v2637 = vld [vmem:[#allocation6 + $0x48] sm:$0xf]
    %v2638 = vld [vmem:[#allocation6 + $0x4c] sm:$0xf]
    %v2639 = vld [vmem:[#allocation6 + $0x50] sm:$0xf]
    %v2640 = vld [vmem:[#allocation6 + $0x54] sm:$0xf]
    %v2641 = vld [vmem:[#allocation6 + $0x58] sm:$0xf]
    %v2642 = vld [vmem:[#allocation6 + $0x5c] sm:$0xf]
    %v2643 = vld [vmem:[#allocation6 + $0x60] sm:$0xf]
    %v2644 = vld [vmem:[#allocation6 + $0x64] sm:$0xf]
    %v2645 = vld [vmem:[#allocation6 + $0x68] sm:$0xf]
    %v2646 = vld [vmem:[#allocation6 + $0x6c] sm:$0xf]
    %v2647 = vld [vmem:[#allocation6 + $0x70] sm:$0xf]
    %v2648 = vld [vmem:[#allocation6 + $0x74] sm:$0xf]
    %v2649 = vld [vmem:[#allocation6 + $0x78] sm:$0xf]
    %v2650 = vld [vmem:[#allocation6 + $0x7c] sm:$0xf]
    %v2651 = vld [vmem:[#allocation6 + $0x80] sm:$0xf]
    %v2652 = vld [vmem:[#allocation6 + $0x84] sm:$0xf]
    %v2653 = vld [vmem:[#allocation6 + $0x88] sm:$0xf]
    %v2654 = vld [vmem:[#allocation6 + $0x8c] sm:$0xf]
    %v2655 = vld [vmem:[#allocation6 + $0x90] sm:$0xf]
    %v2656 = vld [vmem:[#allocation6 + $0x94] sm:$0xf]
    %v2657 = vld [vmem:[#allocation6 + $0x98] sm:$0xf]
    %v2658 = vld [vmem:[#allocation6 + $0x9c] sm:$0xf]
    %v2659 = vld [vmem:[#allocation6 + $0xa0] sm:$0xf]
    %v2660 = vld [vmem:[#allocation6 + $0xa4] sm:$0xf]
    %v2661 = vld [vmem:[#allocation6 + $0xa8] sm:$0xf]
    %v2662 = vld [vmem:[#allocation6 + $0xac] sm:$0xf]
    %v2663 = vld [vmem:[#allocation6 + $0xb0] sm:$0xf]
    %v2664 = vld [vmem:[#allocation6 + $0xb4] sm:$0xf]
    %v2665 = vld [vmem:[#allocation6 + $0xb8] sm:$0xf]
    %v2666 = vld [vmem:[#allocation6 + $0xbc] sm:$0xf]
    %v2667 = vld [vmem:[#allocation6 + $0xc0] sm:$0xf]
    %v2668 = vld [vmem:[#allocation6 + $0xc4] sm:$0xf]
    %v2669 = vld [vmem:[#allocation6 + $0xc8] sm:$0xf]
    %v2670 = vld [vmem:[#allocation6 + $0xcc] sm:$0xf]
    %v2671 = vld [vmem:[#allocation6 + $0xd0] sm:$0xf]
    %v2672 = vld [vmem:[#allocation6 + $0xd4] sm:$0xf]
    %v2673 = vld [vmem:[#allocation6 + $0xd8] sm:$0xf]
    %v2674 = vld [vmem:[#allocation6 + $0xdc] sm:$0xf]
    %v2675 = vld [vmem:[#allocation6 + $0xe0] sm:$0xf]
    %v2676 = vld [vmem:[#allocation6 + $0xe4] sm:$0xf]
    %v2677 = vld [vmem:[#allocation6 + $0xe8] sm:$0xf]
    %v2678 = vld [vmem:[#allocation6 + $0xec] sm:$0xf]
    %v2679 = vld [vmem:[#allocation6 + $0xf0] sm:$0xf]
    %v2680 = vld [vmem:[#allocation6 + $0xf4] sm:$0xf]
    %v2681 = vld [vmem:[#allocation6 + $0xf8] sm:$0xf]
    %v2682 = vld [vmem:[#allocation6 + $0xfc] sm:$0xf]
    %v2683 = vld [vmem:[%s6] sm:$0x1]
    %v2685 = vlaneseq
    %v2686 = vshrl.u32 %v2685, 7
    %v2687 = vsub.s32 0, %v2686
    %v2688 = vrot.slane %v2683, %v2687
    %v2754 = vunpack.c.l.b16 %v2619
    %v2755 = vunpack.c.l.b16 %v2620
    %v2756 = vunpack.c.l.b16 %v2621
    %v2757 = vunpack.c.l.b16 %v2622
    %v2758 = vunpack.c.l.b16 %v2623
    %v2759 = vunpack.c.l.b16 %v2624
    %v2760 = vunpack.c.l.b16 %v2625
    %v2761 = vunpack.c.l.b16 %v2626
    %v2762 = vunpack.c.l.b16 %v2627
    %v2763 = vunpack.c.l.b16 %v2628
    %v2764 = vunpack.c.l.b16 %v2629
    %v2765 = vunpack.c.l.b16 %v2630
    %v2766 = vunpack.c.l.b16 %v2631
    %v2767 = vunpack.c.l.b16 %v2632
    %v2768 = vunpack.c.l.b16 %v2633
    %v2769 = vunpack.c.l.b16 %v2634
    %v2770 = vunpack.c.l.b16 %v2635
    %v2771 = vunpack.c.l.b16 %v2636
    %v2772 = vunpack.c.l.b16 %v2637
    %v2773 = vunpack.c.l.b16 %v2638
    %v2774 = vunpack.c.l.b16 %v2639
    %v2775 = vunpack.c.l.b16 %v2640
    %v2776 = vunpack.c.l.b16 %v2641
    %v2777 = vunpack.c.l.b16 %v2642
    %v2778 = vunpack.c.l.b16 %v2643
    %v2779 = vunpack.c.l.b16 %v2644
    %v2780 = vunpack.c.l.b16 %v2645
    %v2781 = vunpack.c.l.b16 %v2646
    %v2782 = vunpack.c.l.b16 %v2647
    %v2783 = vunpack.c.l.b16 %v2648
    %v2784 = vunpack.c.l.b16 %v2649
    %v2785 = vunpack.c.l.b16 %v2650
    %v2786 = vunpack.c.l.b16 %v2651
    %v2787 = vunpack.c.l.b16 %v2652
    %v2788 = vunpack.c.l.b16 %v2653
    %v2789 = vunpack.c.l.b16 %v2654
    %v2790 = vunpack.c.l.b16 %v2655
    %v2791 = vunpack.c.l.b16 %v2656
    %v2792 = vunpack.c.l.b16 %v2657
    %v2793 = vunpack.c.l.b16 %v2658
    %v2794 = vunpack.c.l.b16 %v2659
    %v2795 = vunpack.c.l.b16 %v2660
    %v2796 = vunpack.c.l.b16 %v2661
    %v2797 = vunpack.c.l.b16 %v2662
    %v2798 = vunpack.c.l.b16 %v2663
    %v2799 = vunpack.c.l.b16 %v2664
    %v2800 = vunpack.c.l.b16 %v2665
    %v2801 = vunpack.c.l.b16 %v2666
    %v2802 = vunpack.c.l.b16 %v2667
    %v2803 = vunpack.c.l.b16 %v2668
    %v2804 = vunpack.c.l.b16 %v2669
    %v2805 = vunpack.c.l.b16 %v2670
    %v2806 = vunpack.c.l.b16 %v2671
    %v2807 = vunpack.c.l.b16 %v2672
    %v2808 = vunpack.c.l.b16 %v2673
    %v2809 = vunpack.c.l.b16 %v2674
    %v2810 = vunpack.c.l.b16 %v2675
    %v2811 = vunpack.c.l.b16 %v2676
    %v2812 = vunpack.c.l.b16 %v2677
    %v2813 = vunpack.c.l.b16 %v2678
    %v2814 = vunpack.c.l.b16 %v2679
    %v2815 = vunpack.c.l.b16 %v2680
    %v2816 = vunpack.c.l.b16 %v2681
    %v2817 = vunpack.c.l.b16 %v2682
    %v2818 = vpack.c.b16 %v2755, %v2754
    %v2819 = vpack.c.b16 %v2757, %v2756
    %v2820 = vpack.c.b16 %v2759, %v2758
    %v2821 = vpack.c.b16 %v2761, %v2760
    %v2822 = vpack.c.b16 %v2763, %v2762
    %v2823 = vpack.c.b16 %v2765, %v2764
    %v2824 = vpack.c.b16 %v2767, %v2766
    %v2825 = vpack.c.b16 %v2769, %v2768
    %v2826 = vpack.c.b16 %v2771, %v2770
    %v2827 = vpack.c.b16 %v2773, %v2772
    %v2828 = vpack.c.b16 %v2775, %v2774
    %v2829 = vpack.c.b16 %v2777, %v2776
    %v2830 = vpack.c.b16 %v2779, %v2778
    %v2831 = vpack.c.b16 %v2781, %v2780
    %v2832 = vpack.c.b16 %v2783, %v2782
    %v2833 = vpack.c.b16 %v2785, %v2784
    %v2834 = vpack.c.b16 %v2787, %v2786
    %v2835 = vpack.c.b16 %v2789, %v2788
    %v2836 = vpack.c.b16 %v2791, %v2790
    %v2837 = vpack.c.b16 %v2793, %v2792
    %v2838 = vpack.c.b16 %v2795, %v2794
    %v2839 = vpack.c.b16 %v2797, %v2796
    %v2840 = vpack.c.b16 %v2799, %v2798
    %v2841 = vpack.c.b16 %v2801, %v2800
    %v2842 = vpack.c.b16 %v2803, %v2802
    %v2843 = vpack.c.b16 %v2805, %v2804
    %v2844 = vpack.c.b16 %v2807, %v2806
    %v2845 = vpack.c.b16 %v2809, %v2808
    %v2846 = vpack.c.b16 %v2811, %v2810
    %v2847 = vpack.c.b16 %v2813, %v2812
    %v2848 = vpack.c.b16 %v2815, %v2814
    %v2849 = vpack.c.b16 %v2817, %v2816
    %2882 = vmatprep.subr.bf16.mxu0 0
    %2883 = vmatpush1.bf16.msra.mxu0 %v2818
    %2884 = vmatprep.subr.bf16.mxu0 0
    %2885 = vmatpush1.bf16.msra.mxu0 %v2819
    %2886 = vmatprep.subr.bf16.mxu0 0
    %2887 = vmatpush1.bf16.msra.mxu0 %v2820
    %2888 = vmatprep.subr.bf16.mxu0 0
    %2889 = vmatpush1.bf16.msra.mxu0 %v2821
    %2890 = vmatprep.subr.bf16.mxu0 0
    %2891 = vmatpush1.bf16.msra.mxu0 %v2822
    %2892 = vmatprep.subr.bf16.mxu0 0
    %2893 = vmatpush1.bf16.msra.mxu0 %v2823
    %2894 = vmatprep.subr.bf16.mxu0 0
    %2895 = vmatpush1.bf16.msra.mxu0 %v2824
    %2896 = vmatprep.subr.bf16.mxu0 0
    %2897 = vmatpush1.bf16.msra.mxu0 %v2825
    %2898 = vmatprep.subr.bf16.mxu0 0
    %2899 = vmatpush1.bf16.msra.mxu0 %v2826
    %2900 = vmatprep.subr.bf16.mxu0 0
    %2901 = vmatpush1.bf16.msra.mxu0 %v2827
    %2902 = vmatprep.subr.bf16.mxu0 0
    %2903 = vmatpush1.bf16.msra.mxu0 %v2828
    %2904 = vmatprep.subr.bf16.mxu0 0
    %2905 = vmatpush1.bf16.msra.mxu0 %v2829
    %2906 = vmatprep.subr.bf16.mxu0 0
    %2907 = vmatpush1.bf16.msra.mxu0 %v2830
    %2908 = vmatprep.subr.bf16.mxu0 0
    %2909 = vmatpush1.bf16.msra.mxu0 %v2831
    %2910 = vmatprep.subr.bf16.mxu0 0
    %2911 = vmatpush1.bf16.msra.mxu0 %v2832
    %2912 = vmatprep.subr.bf16.mxu0 0
    %2913 = vmatpush1.bf16.msra.mxu0 %v2833
    %2914 = vmatprep.mubr.bf16.mxu0 %v2616
    %2915 = vmatmul.mubr.bf16.gmra.mrb[0].mxu0 %v2615
    %v2916 = vpop.f32.mrb[0].mxu0
    %v2917 = vadd.f32 %v2688, %v2916
    %v2918 = vpop.f32.mrb[0].mxu0
    %v2919 = vpop.f32.mrb[0].mxu0
    %v2920 = vpop.f32.mrb[0].mxu0
    %2921 = vdwg.mxu0
    %2922 = vmatprep.subr.bf16.mxu0 0
    %2923 = vmatpush1.bf16.msra.mxu0 %v2834
    %2924 = vmatprep.subr.bf16.mxu0 0
    %2925 = vmatpush1.bf16.msra.mxu0 %v2835
    %2926 = vmatprep.subr.bf16.mxu0 0
    %2927 = vmatpush1.bf16.msra.mxu0 %v2836
    %2928 = vmatprep.subr.bf16.mxu0 0
    %2929 = vmatpush1.bf16.msra.mxu0 %v2837
    %2930 = vmatprep.subr.bf16.mxu0 0
    %2931 = vmatpush1.bf16.msra.mxu0 %v2838
    %2932 = vmatprep.subr.bf16.mxu0 0
    %2933 = vmatpush1.bf16.msra.mxu0 %v2839
    %2934 = vmatprep.subr.bf16.mxu0 0
    %2935 = vmatpush1.bf16.msra.mxu0 %v2840
    %2936 = vmatprep.subr.bf16.mxu0 0
    %2937 = vmatpush1.bf16.msra.mxu0 %v2841
    %2938 = vmatprep.subr.bf16.mxu0 0
    %2939 = vmatpush1.bf16.msra.mxu0 %v2842
    %2940 = vmatprep.subr.bf16.mxu0 0
    %2941 = vmatpush1.bf16.msra.mxu0 %v2843
    %2942 = vmatprep.subr.bf16.mxu0 0
    %2943 = vmatpush1.bf16.msra.mxu0 %v2844
    %2944 = vmatprep.subr.bf16.mxu0 0
    %2945 = vmatpush1.bf16.msra.mxu0 %v2845
    %2946 = vmatprep.subr.bf16.mxu0 0
    %2947 = vmatpush1.bf16.msra.mxu0 %v2846
    %2948 = vmatprep.subr.bf16.mxu0 0
    %2949 = vmatpush1.bf16.msra.mxu0 %v2847
    %2950 = vmatprep.subr.bf16.mxu0 0
    %2951 = vmatpush1.bf16.msra.mxu0 %v2848
    %2952 = vmatprep.subr.bf16.mxu0 0
    %2953 = vmatpush1.bf16.msra.mxu0 %v2849
    %2954 = vmatprep.mubr.bf16.mxu0 %v2618
    %2955 = vmatmul.mubr.bf16.gmra.mrb[0].mxu0 %v2617
    %v2956 = vpop.f32.mrb[0].mxu0
    %v2957 = vadd.f32 %v2917, %v2956
    %v2958 = vpop.f32.mrb[0].mxu0
    %v2959 = vpop.f32.mrb[0].mxu0
    %v2960 = vpop.f32.mrb[0].mxu0
    %2961 = vdwg.mxu0
    %v2962 = vmax.f32 %v2957, 0.0
    %v2963 = vpack.c.bf16 %v2962, %v2962
    %2964 = vst [vmem:[%s7] sm:$0x1] %v2963
    // Predicated region
    $region42: #{neural_network_forward.1} parent=1 // pred_check
      _
    $region43: #{neural_network_forward.1} parent=1 // pred_check_branch
      %2966 = sbr.rel (0) target = $region45
    $region44: #{neural_network_forward.1} parent=1 // pred_region
      _
    $region45: #{neural_network_forward.1} parent=1 // pred_fallthru
      _
    // Predicated region
    $region46: #{neural_network_forward.1} parent=1 // pred_check
      _
    $region47: #{neural_network_forward.1} parent=1 // pred_check_branch
      %2968 = sbr.rel (0) target = $region49
    $region48: #{neural_network_forward.1} parent=1 // pred_region
      _
    $region49: #{neural_network_forward.1} parent=1 // pred_fallthru
      _
    %2969 = vsyncpa [#allocation3], 1
    %2970 = vsyncpa [#allocation5], 1

</llo_original>
